<compile_context>
chip_gen: v7x
topology: tpu7x:2x2x1
jax: 0.10.0
libtpu: 0.0.40
codegen_flags: <defaults>
</compile_context>

<pallas_src>
import math

import jax
import jax.numpy as jnp
from jax.experimental import pallas as pl
from jax.experimental.pallas import tpu as pltpu

EPS = 1e-5
LANE = 128


def _round_up(x, m):
    return ((x + m - 1) // m) * m


def _device_kind():
    try:
        return jax.devices()[0].device_kind.lower()
    except Exception:
        return ""


_KIND = _device_kind()
# v5e MXU is 128-wide: TC=256 buys nothing but doubles per-step VMEM.  v6e/v7x: 256.
_MXU_TILE = 128 if "v5" in _KIND else 256
# v5e/v6e have 128 MiB physical VMEM -> 64 MiB scoped cap; keep ~48 MiB elsewhere (v7x: 64 MiB phys).
_VMEM_LIMIT = (64 if ("v5" in _KIND or "v6" in _KIND) else 48) * 1024 * 1024


def _pick_row_tile(hw):
    for t in (512, 256, 128, 64, 32, 16, 8):
        if hw % t == 0:
            return t
    return hw


def _pad_channels(x, cp):
    c = x.shape[-1]
    if c == cp:
        return x
    return jnp.pad(x, [(0, 0)] * (x.ndim - 1) + [(0, cp - c)])


# ----------------------------- 3x3 conv + BN + ReLU ------------------------------

def _make_conv_kernel(n_inputs, B, H, W):
    """Fused 3x3 conv (+ folded BN + ReLU) over channel-concatenated inputs.

    Grid is (cout_tiles,).  The im2col scratch spans B*H*W rows (batch folded into M) and
    is built once at cout_tile == 0, then reused by every channel tile.  NOTE: the scratch
    is carried across the cout-tile axis, so that axis MUST stay the only ("arbitrary")
    grid axis; do not mark it parallel or add axes after it without rethinking the carry.
    """
    HW = H * W

    def kernel(*args):
        x_refs = args[:n_inputs]
        w_ref, scale_ref, shift_ref, o_ref, col_ref = args[n_inputs:]
        TC = o_ref.shape[1]

        @pl.when(pl.program_id(0) == 0)
        def _build_im2col():
            off = 0
            for x_ref in x_refs:
                cinp = x_ref.shape[3]          # padded to a multiple of 128
                for b in range(B):
                    for dy in range(3):
                        for dx in range(3):
                            tap = dy * 3 + dx
                            patch = x_ref[b, dy:dy + H, dx:dx + W, :]      # (H, W, cinp)
                            # 128-aligned, full-width (unmasked) column write.
                            col_ref[b * HW:(b + 1) * HW,
                                    off + tap * cinp: off + (tap + 1) * cinp] = (
                                patch.reshape(HW, cinp))
                off += 9 * cinp

        # One wide-K matmul: bf16 operands, f32 accumulation.
        y = jnp.dot(col_ref[...], w_ref[...], preferred_element_type=jnp.float32)
        y = y * scale_ref[...] + shift_ref[...]        # folded BN (f32)
        y = jnp.maximum(y, 0.0)                        # ReLU (f32)
        o_ref[...] = y.astype(o_ref.dtype)             # lane-dense (B*H*W, TC) store

    return kernel


def conv3x3_bn_relu(inputs, p, out_dtype=jnp.bfloat16):
    """Conv2dReLU over channel-concatenated `inputs` (list of channel-padded NHWC arrays)."""
    B, H, W, _ = inputs[0].shape
    cinps = p["cinps"]
    assert len(inputs) == len(cinps)
    padded = []
    ktot = 0
    for x, cp in zip(inputs, cinps):
        assert x.shape[-1] == cp, (x.shape, cp)
        padded.append(jnp.pad(x.astype(jnp.bfloat16), ((0, 0), (1, 1), (1, 1), (0, 0))))
        ktot += 9 * cp

    w = p["w"]
    coutp = int(w.shape[-1])
    TC = _MXU_TILE if coutp % _MXU_TILE == 0 else 128
    mrows = B * H * W

    in_specs = [pl.BlockSpec((B, H + 2, W + 2, cp), lambda ct: (0, 0, 0, 0))
                for cp in cinps]
    in_specs += [
        pl.BlockSpec((ktot, TC), lambda ct: (0, ct)),
        pl.BlockSpec((1, TC), lambda ct: (0, ct)),
        pl.BlockSpec((1, TC), lambda ct: (0, ct)),
    ]

    out = pl.pallas_call(
        _make_conv_kernel(len(inputs), B, H, W),
        out_shape=jax.ShapeDtypeStruct((mrows, coutp), out_dtype),
        grid=(coutp // TC,),
        in_specs=in_specs,
        out_specs=pl.BlockSpec((mrows, TC), lambda ct: (0, ct)),
        scratch_shapes=[pltpu.VMEM((mrows, ktot), jnp.bfloat16)],
        compiler_params=pltpu.CompilerParams(
            dimension_semantics=("arbitrary",),     # im2col scratch carried across ct
            vmem_limit_bytes=_VMEM_LIMIT),
    )(*padded, w, p["scale"], p["shift"])
    return out.reshape(B, H, W, coutp)


# ----------------------------- attention gate ------------------------------------

def _attention_gate_kernel(g_ref, x_ref,
                           wg_ref, sg_ref, cg_ref,
                           wx_ref, sx_ref, cx_ref,
                           wp_ref, cp_ref,
                           o_ref):
    g = g_ref[0]                                   # (TM, Fgp) bf16
    x = x_ref[0]                                   # (TM, Flp) bf16

    g1 = jnp.dot(g, wg_ref[...], preferred_element_type=jnp.float32) * sg_ref[...] + cg_ref[...]
    x1 = jnp.dot(x, wx_ref[...], preferred_element_type=jnp.float32) * sx_ref[...] + cx_ref[...]
    pre = jnp.maximum(g1 + x1, 0.0)                # ReLU, f32

    # psi: 1x1 conv to one channel (BN scale pre-folded into wp) + scalar shift from SMEM.
    psi = jnp.sum(pre * wp_ref[...], axis=-1, keepdims=True) + cp_ref[0]
    psi = jax.nn.sigmoid(psi)

    o_ref[0] = (x.astype(jnp.float32) * psi).astype(o_ref.dtype)


def attention_gate(g, x, p):
    """AttentionGate: attended skip features (channel-padded NHWC, bf16), same shape as x."""
    B, H, W, Fgp = g.shape
    Flp = x.shape[-1]
    HW = H * W
    TM = _pick_row_tile(HW)

    g2 = g.reshape(B, HW, Fgp)
    x2 = x.reshape(B, HW, Flp)

    out = pl.pallas_call(
        _attention_gate_kernel,
        out_shape=jax.ShapeDtypeStruct((B, HW, Flp), x.dtype),
        grid=(B, HW // TM),
        in_specs=[
            pl.BlockSpec((1, TM, Fgp), lambda b, r: (b, r, 0)),
            pl.BlockSpec((1, TM, Flp), lambda b, r: (b, r, 0)),
            pl.BlockSpec(p["wg"].shape, lambda b, r: (0, 0)),
            pl.BlockSpec(p["sg"].shape, lambda b, r: (0, 0)),
            pl.BlockSpec(p["cg"].shape, lambda b, r: (0, 0)),
            pl.BlockSpec(p["wx"].shape, lambda b, r: (0, 0)),
            pl.BlockSpec(p["sx"].shape, lambda b, r: (0, 0)),
            pl.BlockSpec(p["cx"].shape, lambda b, r: (0, 0)),
            pl.BlockSpec(p["wp"].shape, lambda b, r: (0, 0)),
            pl.BlockSpec(memory_space=pltpu.MemorySpace.SMEM),   # scalar psi shift
        ],
        out_specs=pl.BlockSpec((1, TM, Flp), lambda b, r: (b, r, 0)),
        compiler_params=pltpu.CompilerParams(
            dimension_semantics=("parallel", "parallel"),
            vmem_limit_bytes=_VMEM_LIMIT),
    )(g2, x2, p["wg"], p["sg"], p["cg"], p["wx"], p["sx"], p["cx"], p["wp"], p["cp"])
    return out.reshape(B, H, W, Flp)


# ----------------------------- bilinear 2x upsample -------------------------------

def _interp_matrix(n_in, n_out):
    # nn.UpsamplingBilinear2d => align_corners=True: src = dst * (n_in-1)/(n_out-1)
    if n_in == 1:
        return jnp.ones((n_out, 1), jnp.float32)
    pos = jnp.arange(n_out, dtype=jnp.float32) * (n_in - 1) / (n_out - 1)
    i0 = jnp.clip(jnp.floor(pos).astype(jnp.int32), 0, n_in - 1)
    i1 = jnp.clip(i0 + 1, 0, n_in - 1)
    w1 = pos - i0.astype(jnp.float32)
    m = jnp.zeros((n_out, n_in), jnp.float32)
    m = m.at[jnp.arange(n_out), i0].add(1.0 - w1)
    m = m.at[jnp.arange(n_out), i1].add(w1)
    return m


def _make_upsample_kernel(H, W, C):
    H2, W2 = 2 * H, 2 * W

    def kernel(x_ref, uh_ref, o_ref):
        # Rows: (2H, H) @ (H, W*C) MXU matmul, bf16 operands, f32 accumulation.
        t = jnp.dot(uh_ref[...], x_ref[0], preferred_element_type=jnp.float32)  # (2H, W*C)
        # Columns: static lerp, every slice/store is C-wide and 128-aligned.
        for wo in range(W2):
            if W == 1:
                col = t[:, 0:C]
            else:
                pos = wo * (W - 1) / (W2 - 1)
                i0 = min(int(math.floor(pos)), W - 1)
                i1 = min(i0 + 1, W - 1)
                f = pos - float(i0)
                col = (1.0 - f) * t[:, i0 * C:(i0 + 1) * C] + f * t[:, i1 * C:(i1 + 1) * C]
            o_ref[0, :, wo * C:(wo + 1) * C] = col.astype(o_ref.dtype)

    return kernel


def bilinear_upsample_x2(x):
    """x: (B, H, W, C) channel-padded NHWC -> (B, 2H, 2W, C), align_corners=True."""
    B, H, W, C = x.shape
    uh = _interp_matrix(H, 2 * H).astype(jnp.bfloat16)      # (2H, H)
    xf = x.reshape(B, H, W * C)
    out = pl.pallas_call(
        _make_upsample_kernel(H, W, C),
        out_shape=jax.ShapeDtypeStruct((B, 2 * H, 2 * W * C), x.dtype),
        grid=(B,),
        in_specs=[
            pl.BlockSpec((1, H, W * C), lambda b: (b, 0, 0)),
            pl.BlockSpec((2 * H, H), lambda b: (0, 0)),
        ],
        out_specs=pl.BlockSpec((1, 2 * H, 2 * W * C), lambda b: (b, 0, 0)),
        compiler_params=pltpu.CompilerParams(
            dimension_semantics=("parallel",),
            vmem_limit_bytes=_VMEM_LIMIT),
    )(xf, uh)
    return out.reshape(B, 2 * H, 2 * W, C)


# ----------------------------- parameters ---------------------------------

def make_conv2drelu_params(key, cins, cout):
    """3x3 conv (no bias, use_batchnorm=True) + eval-mode BN, folded; K and N zero-padded
    to multiples of 128 (matching the channel-padded activation pipeline)."""
    if isinstance(cins, int):
        cins = [cins]
    coutp = _round_up(cout, LANE)
    kw, kg, kb = jax.random.split(key, 3)
    kws = jax.random.split(kw, len(cins))
    chunks, cinps = [], []
    for kwi, cin in zip(kws, cins):
        cinp = _round_up(cin, LANE)
        cinps.append(cinp)
        wi = 0.05 * jax.random.normal(kwi, (3, 3, cin, cout), jnp.float32)
        wi = jnp.pad(wi, ((0, 0), (0, 0), (0, cinp - cin), (0, coutp - cout)))
        chunks.append(wi.reshape(9 * cinp, coutp))
    w = jnp.concatenate(chunks, axis=0)

    gamma = 1.0 + 0.1 * jax.random.normal(kg, (cout,), jnp.float32)
    beta = 0.1 * jax.random.normal(kb, (cout,), jnp.float32)
    running_mean = jnp.zeros((cout,), jnp.float32)       # eval-mode stats
    running_var = jnp.ones((cout,), jnp.float32)
    scale = gamma / jnp.sqrt(running_var + EPS)
    shift = beta - running_mean * scale
    scale = jnp.pad(scale, (0, coutp - cout)).reshape(1, coutp)
    shift = jnp.pad(shift, (0, coutp - cout)).reshape(1, coutp)
    return {"w": w.astype(jnp.bfloat16), "scale": scale, "shift": shift,
            "cinps": tuple(cinps), "cout": cout, "coutp": coutp}


def make_attention_gate_params(key, fg, fl, fint):
    fgp, flp, fintp = (_round_up(c, LANE) for c in (fg, fl, fint))
    ks = jax.random.split(key, 12)

    def fold(kw_, kb_, kg_, kbeta_, cin, cout):
        # 1x1 conv (with bias) + eval-mode BN folded: y = scale*(Wx) + ((b-mean)*scale + beta)
        w = 0.1 * jax.random.normal(kw_, (cin, cout), jnp.float32)
        b = 0.1 * jax.random.normal(kb_, (cout,), jnp.float32)
        gamma = 1.0 + 0.1 * jax.random.normal(kg_, (cout,), jnp.float32)
        beta = 0.1 * jax.random.normal(kbeta_, (cout,), jnp.float32)
        rm = jnp.zeros((cout,), jnp.float32)
        rv = jnp.ones((cout,), jnp.float32)
        scale = gamma / jnp.sqrt(rv + EPS)
        shift = (b - rm) * scale + beta
        return w, scale, shift

    wg, sg, cg = fold(ks[0], ks[1], ks[2], ks[3], fg, fint)
    wx, sx, cx = fold(ks[4], ks[5], ks[6], ks[7], fl, fint)
    wp, sp, cp = fold(ks[8], ks[9], ks[10], ks[11], fint, 1)

    def pad2(a, r, c):
        return jnp.pad(a, ((0, r - a.shape[0]), (0, c - a.shape[1])))

    def padrow(a, c):
        return jnp.pad(a, (0, c - a.shape[0])).reshape(1, c)

    wp_row = wp[:, 0] * sp[0]                            # fold psi BN scale into weights
    return {
        "wg": pad2(wg, fgp, fintp).astype(jnp.bfloat16),
        "sg": padrow(sg, fintp), "cg": padrow(cg, fintp),
        "wx": pad2(wx, flp, fintp).astype(jnp.bfloat16),
        "sx": padrow(sx, fintp), "cx": padrow(cx, fintp),
        "wp": padrow(wp_row, fintp).astype(jnp.float32),
        "cp": cp.reshape(1).astype(jnp.float32),         # scalar psi shift -> SMEM
        "flp": flp,
    }


def make_decoder_cup_params(key, hidden_size, decoder_channels, skip_channels):
    head_channels = 512  # hard-coded in the PyTorch module
    n_blocks = len(decoder_channels)
    keys = jax.random.split(key, 1 + 3 * n_blocks)
    params = {"conv_more": make_conv2drelu_params(keys[0], [hidden_size], head_channels)}

    in_channels = [head_channels] + list(decoder_channels[:-1])
    out_channels = list(decoder_channels)
    ordered_skip = list(skip_channels)[::-1]

    blocks = []
    ki = 1
    for i in range(n_blocks):
        bin_ch = in_channels[i]
        bout_ch = out_channels[i]
        bskip = ordered_skip[i] if i < len(ordered_skip) else 0
        ag = None
        if bskip > 0:
            fint = (bskip // 2) or 1
            ag = make_attention_gate_params(keys[ki], bin_ch, bskip, fint)
        ki += 1
        conv1_cins = [bin_ch, bskip] if bskip > 0 else [bin_ch]
        conv1 = make_conv2drelu_params(keys[ki], conv1_cins, bout_ch); ki += 1
        conv2 = make_conv2drelu_params(keys[ki], [bout_ch], bout_ch); ki += 1
        blocks.append({"ag": ag, "conv1": conv1, "conv2": conv2})
    params["blocks"] = blocks
    return params


# ----------------------------- forward ------------------------------------

def decoder_cup_forward(hidden_states, features, params, n_skip):
    """hidden_states: (B, n_patch, hidden); features: list of NHWC arrays (or None)."""
    B, n_patch, hidden = hidden_states.shape
    h = w = int(math.sqrt(n_patch))
    # PyTorch: permute(0,2,1).view(B, hidden, h, w) in NCHW  ==  this NHWC reshape.
    x = hidden_states.reshape(B, h, w, hidden).astype(jnp.bfloat16)
    x = _pad_channels(x, params["conv_more"]["cinps"][0])
    x = conv3x3_bn_relu([x], params["conv_more"])        # channel-padded bf16

    num_features = len(features) if features is not None else 0
    n_blocks = len(params["blocks"])
    for i, bp in enumerate(params["blocks"]):
        x = bilinear_upsample_x2(x)                      # AttentionDecoderBlock.up
        feature_index = num_features - 1 - i
        use_skip = (features is not None and n_skip > 0 and feature_index >= 0
                    and feature_index >= num_features - n_skip)
        skip = features[feature_index] if use_skip else None

        last = (i == n_blocks - 1)
        out_dtype = jnp.float32 if last else jnp.bfloat16

        if skip is not None:
            skip = _pad_channels(skip.astype(jnp.bfloat16), bp["conv1"]["cinps"][1])
            if bp["ag"] is not None:
                skip = attention_gate(x, skip, bp["ag"])
            # Fused torch.cat([x, skip], dim=channel): two inputs, K split at the boundary.
            x = conv3x3_bn_relu([x, skip], bp["conv1"])
        else:
            x = conv3x3_bn_relu([x], bp["conv1"])
        x = conv3x3_bn_relu([x], bp["conv2"], out_dtype=out_dtype)

    # Strip the channel padding only at the very end.
    return x[..., :params["blocks"][-1]["conv2"]["cout"]]


# ----------------------------- main ----------------------------------------

if __name__ == "__main__":
    key = jax.random.PRNGKey(0)
    k_param, k_hidden, k_f0, k_f1 = jax.random.split(key, 4)

    # Small synthetic config
    B = 2
    n_patch = 16              # -> 4x4 feature map
    hidden_size = 32
    decoder_channels = (64, 16)
    skip_channels = [16, 8]   # reversed per-block -> block0 skip=8, block1 skip=16
    n_skip = 2

    params = make_decoder_cup_params(k_param, hidden_size, decoder_channels, skip_channels)

    hidden_states = jax.random.normal(k_hidden, (B, n_patch, hidden_size), jnp.float32)
    # features (NHWC), resolutions matching the decoder's upsampled gate signals:
    #   block 0 uses features[1] at 8x8 with 8 channels
    #   block 1 uses features[0] at 16x16 with 16 channels
    features = [
        jax.random.normal(k_f0, (B, 16, 16, 16), jnp.float32),
        jax.random.normal(k_f1, (B, 8, 8, 8), jnp.float32),
    ]

    out = decoder_cup_forward(hidden_states, features, params, n_skip)
    jax.block_until_ready(out)
    assert out.shape == (B, 16, 16, decoder_channels[-1])
    assert out.dtype == jnp.float32
    print("KERNEL_OK")
</pallas_src>

<mosaic_0001>
module attributes {stable_mosaic.version = 11 : i64} {
  func.func @kernel(%arg0: i32, %arg1: memref<2x6x6x128xbf16, #tpu.memory_space<vmem>>, %arg2: memref<1152x256xbf16, #tpu.memory_space<vmem>>, %arg3: memref<1x256xf32, #tpu.memory_space<vmem>>, %arg4: memref<1x256xf32, #tpu.memory_space<vmem>>, %arg5: memref<32x256xbf16, #tpu.memory_space<vmem>>, %arg6: memref<32x1152xbf16, #tpu.memory_space<vmem>>) attributes {dimension_semantics = [#tpu.dimension_semantics<arbitrary>], iteration_bounds = array<i64: 2>, scalar_prefetch = 0 : i64, scratch_operands = 1 : i64, tpu.core_type = #tpu.core_type<tc>, window_params = [{pipeline_mode = #tpu.pipeline_mode<synchronous>, transform_indices = @transform_0, window_bounds = array<i64: 2, 6, 6, 128>}, {transform_indices = @transform_1, window_bounds = array<i64: 1152, 256>}, {transform_indices = @transform_2, window_bounds = array<i64: 1, 256>}, {transform_indices = @transform_3, window_bounds = array<i64: 1, 256>}, {transform_indices = @transform_4, window_bounds = array<i64: 32, 256>}]} {
    %c0_i32 = arith.constant 0 : i32
    %0 = arith.cmpi eq, %arg0, %c0_i32 : i32
    %1 = arith.extui %0 : i1 to i32
    %c0_i32_0 = arith.constant 0 : i32
    %2 = arith.cmpi ne, %1, %c0_i32_0 : i32
    scf.if %2 {
      %c0_11 = arith.constant 0 : index
      %c0_12 = arith.constant 0 : index
      %c0_13 = arith.constant 0 : index
      %c0_14 = arith.constant 0 : index
      %16 = vector.load %arg1[%c0_11, %c0_12, %c0_13, %c0_14] : memref<2x6x6x128xbf16, #tpu.memory_space<vmem>>, vector<1x4x4x128xbf16>
      %17 = vector.shape_cast %16 : vector<1x4x4x128xbf16> to vector<4x4x128xbf16>
      %18 = vector.shape_cast %17 : vector<4x4x128xbf16> to vector<16x128xbf16>
      %c0_15 = arith.constant 0 : index
      %c0_16 = arith.constant 0 : index
      %19 = vector.load %arg6[%c0_15, %c0_16] : memref<32x1152xbf16, #tpu.memory_space<vmem>>, vector<16x128xbf16>
      tpu.vector_store %arg6[%c0_15, %c0_16], %18 {strides = array<i32>} : memref<32x1152xbf16, #tpu.memory_space<vmem>>, vector<16x128xbf16>,
      %c0_17 = arith.constant 0 : index
      %c0_18 = arith.constant 0 : index
      %c1 = arith.constant 1 : index
      %c0_19 = arith.constant 0 : index
      %20 = vector.load %arg1[%c0_17, %c0_18, %c1, %c0_19] : memref<2x6x6x128xbf16, #tpu.memory_space<vmem>>, vector<1x4x4x128xbf16>
      %21 = vector.shape_cast %20 : vector<1x4x4x128xbf16> to vector<4x4x128xbf16>
      %22 = vector.shape_cast %21 : vector<4x4x128xbf16> to vector<16x128xbf16>
      %c0_20 = arith.constant 0 : index
      %c128 = arith.constant 128 : index
      %23 = vector.load %arg6[%c0_20, %c128] : memref<32x1152xbf16, #tpu.memory_space<vmem>>, vector<16x128xbf16>
      tpu.vector_store %arg6[%c0_20, %c128], %22 {strides = array<i32>} : memref<32x1152xbf16, #tpu.memory_space<vmem>>, vector<16x128xbf16>,
      %c0_21 = arith.constant 0 : index
      %c0_22 = arith.constant 0 : index
      %c2 = arith.constant 2 : index
      %c0_23 = arith.constant 0 : index
      %24 = vector.load %arg1[%c0_21, %c0_22, %c2, %c0_23] : memref<2x6x6x128xbf16, #tpu.memory_space<vmem>>, vector<1x4x4x128xbf16>
      %25 = vector.shape_cast %24 : vector<1x4x4x128xbf16> to vector<4x4x128xbf16>
      %26 = vector.shape_cast %25 : vector<4x4x128xbf16> to vector<16x128xbf16>
      %c0_24 = arith.constant 0 : index
      %c256 = arith.constant 256 : index
      %27 = vector.load %arg6[%c0_24, %c256] : memref<32x1152xbf16, #tpu.memory_space<vmem>>, vector<16x128xbf16>
      tpu.vector_store %arg6[%c0_24, %c256], %26 {strides = array<i32>} : memref<32x1152xbf16, #tpu.memory_space<vmem>>, vector<16x128xbf16>,
      %c0_25 = arith.constant 0 : index
      %c1_26 = arith.constant 1 : index
      %c0_27 = arith.constant 0 : index
      %c0_28 = arith.constant 0 : index
      %28 = vector.load %arg1[%c0_25, %c1_26, %c0_27, %c0_28] : memref<2x6x6x128xbf16, #tpu.memory_space<vmem>>, vector<1x4x4x128xbf16>
      %29 = vector.shape_cast %28 : vector<1x4x4x128xbf16> to vector<4x4x128xbf16>
      %30 = vector.shape_cast %29 : vector<4x4x128xbf16> to vector<16x128xbf16>
      %c0_29 = arith.constant 0 : index
      %c384 = arith.constant 384 : index
      %31 = vector.load %arg6[%c0_29, %c384] : memref<32x1152xbf16, #tpu.memory_space<vmem>>, vector<16x128xbf16>
      tpu.vector_store %arg6[%c0_29, %c384], %30 {strides = array<i32>} : memref<32x1152xbf16, #tpu.memory_space<vmem>>, vector<16x128xbf16>,
      %c0_30 = arith.constant 0 : index
      %c1_31 = arith.constant 1 : index
      %c1_32 = arith.constant 1 : index
      %c0_33 = arith.constant 0 : index
      %32 = vector.load %arg1[%c0_30, %c1_31, %c1_32, %c0_33] : memref<2x6x6x128xbf16, #tpu.memory_space<vmem>>, vector<1x4x4x128xbf16>
      %33 = vector.shape_cast %32 : vector<1x4x4x128xbf16> to vector<4x4x128xbf16>
      %34 = vector.shape_cast %33 : vector<4x4x128xbf16> to vector<16x128xbf16>
      %c0_34 = arith.constant 0 : index
      %c512 = arith.constant 512 : index
      %35 = vector.load %arg6[%c0_34, %c512] : memref<32x1152xbf16, #tpu.memory_space<vmem>>, vector<16x128xbf16>
      tpu.vector_store %arg6[%c0_34, %c512], %34 {strides = array<i32>} : memref<32x1152xbf16, #tpu.memory_space<vmem>>, vector<16x128xbf16>,
      %c0_35 = arith.constant 0 : index
      %c1_36 = arith.constant 1 : index
      %c2_37 = arith.constant 2 : index
      %c0_38 = arith.constant 0 : index
      %36 = vector.load %arg1[%c0_35, %c1_36, %c2_37, %c0_38] : memref<2x6x6x128xbf16, #tpu.memory_space<vmem>>, vector<1x4x4x128xbf16>
      %37 = vector.shape_cast %36 : vector<1x4x4x128xbf16> to vector<4x4x128xbf16>
      %38 = vector.shape_cast %37 : vector<4x4x128xbf16> to vector<16x128xbf16>
      %c0_39 = arith.constant 0 : index
      %c640 = arith.constant 640 : index
      %39 = vector.load %arg6[%c0_39, %c640] : memref<32x1152xbf16, #tpu.memory_space<vmem>>, vector<16x128xbf16>
      tpu.vector_store %arg6[%c0_39, %c640], %38 {strides = array<i32>} : memref<32x1152xbf16, #tpu.memory_space<vmem>>, vector<16x128xbf16>,
      %c0_40 = arith.constant 0 : index
      %c2_41 = arith.constant 2 : index
      %c0_42 = arith.constant 0 : index
      %c0_43 = arith.constant 0 : index
      %40 = vector.load %arg1[%c0_40, %c2_41, %c0_42, %c0_43] : memref<2x6x6x128xbf16, #tpu.memory_space<vmem>>, vector<1x4x4x128xbf16>
      %41 = vector.shape_cast %40 : vector<1x4x4x128xbf16> to vector<4x4x128xbf16>
      %42 = vector.shape_cast %41 : vector<4x4x128xbf16> to vector<16x128xbf16>
      %c0_44 = arith.constant 0 : index
      %c768 = arith.constant 768 : index
      %43 = vector.load %arg6[%c0_44, %c768] : memref<32x1152xbf16, #tpu.memory_space<vmem>>, vector<16x128xbf16>
      tpu.vector_store %arg6[%c0_44, %c768], %42 {strides = array<i32>} : memref<32x1152xbf16, #tpu.memory_space<vmem>>, vector<16x128xbf16>,
      %c0_45 = arith.constant 0 : index
      %c2_46 = arith.constant 2 : index
      %c1_47 = arith.constant 1 : index
      %c0_48 = arith.constant 0 : index
      %44 = vector.load %arg1[%c0_45, %c2_46, %c1_47, %c0_48] : memref<2x6x6x128xbf16, #tpu.memory_space<vmem>>, vector<1x4x4x128xbf16>
      %45 = vector.shape_cast %44 : vector<1x4x4x128xbf16> to vector<4x4x128xbf16>
      %46 = vector.shape_cast %45 : vector<4x4x128xbf16> to vector<16x128xbf16>
      %c0_49 = arith.constant 0 : index
      %c896 = arith.constant 896 : index
      %47 = vector.load %arg6[%c0_49, %c896] : memref<32x1152xbf16, #tpu.memory_space<vmem>>, vector<16x128xbf16>
      tpu.vector_store %arg6[%c0_49, %c896], %46 {strides = array<i32>} : memref<32x1152xbf16, #tpu.memory_space<vmem>>, vector<16x128xbf16>,
      %c0_50 = arith.constant 0 : index
      %c2_51 = arith.constant 2 : index
      %c2_52 = arith.constant 2 : index
      %c0_53 = arith.constant 0 : index
      %48 = vector.load %arg1[%c0_50, %c2_51, %c2_52, %c0_53] : memref<2x6x6x128xbf16, #tpu.memory_space<vmem>>, vector<1x4x4x128xbf16>
      %49 = vector.shape_cast %48 : vector<1x4x4x128xbf16> to vector<4x4x128xbf16>
      %50 = vector.shape_cast %49 : vector<4x4x128xbf16> to vector<16x128xbf16>
      %c0_54 = arith.constant 0 : index
      %c1024 = arith.constant 1024 : index
      %51 = vector.load %arg6[%c0_54, %c1024] : memref<32x1152xbf16, #tpu.memory_space<vmem>>, vector<16x128xbf16>
      tpu.vector_store %arg6[%c0_54, %c1024], %50 {strides = array<i32>} : memref<32x1152xbf16, #tpu.memory_space<vmem>>, vector<16x128xbf16>,
      %c1_55 = arith.constant 1 : index
      %c0_56 = arith.constant 0 : index
      %c0_57 = arith.constant 0 : index
      %c0_58 = arith.constant 0 : index
      %52 = vector.load %arg1[%c1_55, %c0_56, %c0_57, %c0_58] : memref<2x6x6x128xbf16, #tpu.memory_space<vmem>>, vector<1x4x4x128xbf16>
      %53 = vector.shape_cast %52 : vector<1x4x4x128xbf16> to vector<4x4x128xbf16>
      %54 = vector.shape_cast %53 : vector<4x4x128xbf16> to vector<16x128xbf16>
      %c16 = arith.constant 16 : index
      %c0_59 = arith.constant 0 : index
      %55 = vector.load %arg6[%c16, %c0_59] : memref<32x1152xbf16, #tpu.memory_space<vmem>>, vector<16x128xbf16>
      tpu.vector_store %arg6[%c16, %c0_59], %54 {strides = array<i32>} : memref<32x1152xbf16, #tpu.memory_space<vmem>>, vector<16x128xbf16>,
      %c1_60 = arith.constant 1 : index
      %c0_61 = arith.constant 0 : index
      %c1_62 = arith.constant 1 : index
      %c0_63 = arith.constant 0 : index
      %56 = vector.load %arg1[%c1_60, %c0_61, %c1_62, %c0_63] : memref<2x6x6x128xbf16, #tpu.memory_space<vmem>>, vector<1x4x4x128xbf16>
      %57 = vector.shape_cast %56 : vector<1x4x4x128xbf16> to vector<4x4x128xbf16>
      %58 = vector.shape_cast %57 : vector<4x4x128xbf16> to vector<16x128xbf16>
      %c16_64 = arith.constant 16 : index
      %c128_65 = arith.constant 128 : index
      %59 = vector.load %arg6[%c16_64, %c128_65] : memref<32x1152xbf16, #tpu.memory_space<vmem>>, vector<16x128xbf16>
      tpu.vector_store %arg6[%c16_64, %c128_65], %58 {strides = array<i32>} : memref<32x1152xbf16, #tpu.memory_space<vmem>>, vector<16x128xbf16>,
      %c1_66 = arith.constant 1 : index
      %c0_67 = arith.constant 0 : index
      %c2_68 = arith.constant 2 : index
      %c0_69 = arith.constant 0 : index
      %60 = vector.load %arg1[%c1_66, %c0_67, %c2_68, %c0_69] : memref<2x6x6x128xbf16, #tpu.memory_space<vmem>>, vector<1x4x4x128xbf16>
      %61 = vector.shape_cast %60 : vector<1x4x4x128xbf16> to vector<4x4x128xbf16>
      %62 = vector.shape_cast %61 : vector<4x4x128xbf16> to vector<16x128xbf16>
      %c16_70 = arith.constant 16 : index
      %c256_71 = arith.constant 256 : index
      %63 = vector.load %arg6[%c16_70, %c256_71] : memref<32x1152xbf16, #tpu.memory_space<vmem>>, vector<16x128xbf16>
      tpu.vector_store %arg6[%c16_70, %c256_71], %62 {strides = array<i32>} : memref<32x1152xbf16, #tpu.memory_space<vmem>>, vector<16x128xbf16>,
      %c1_72 = arith.constant 1 : index
      %c1_73 = arith.constant 1 : index
      %c0_74 = arith.constant 0 : index
      %c0_75 = arith.constant 0 : index
      %64 = vector.load %arg1[%c1_72, %c1_73, %c0_74, %c0_75] : memref<2x6x6x128xbf16, #tpu.memory_space<vmem>>, vector<1x4x4x128xbf16>
      %65 = vector.shape_cast %64 : vector<1x4x4x128xbf16> to vector<4x4x128xbf16>
      %66 = vector.shape_cast %65 : vector<4x4x128xbf16> to vector<16x128xbf16>
      %c16_76 = arith.constant 16 : index
      %c384_77 = arith.constant 384 : index
      %67 = vector.load %arg6[%c16_76, %c384_77] : memref<32x1152xbf16, #tpu.memory_space<vmem>>, vector<16x128xbf16>
      tpu.vector_store %arg6[%c16_76, %c384_77], %66 {strides = array<i32>} : memref<32x1152xbf16, #tpu.memory_space<vmem>>, vector<16x128xbf16>,
      %c1_78 = arith.constant 1 : index
      %c1_79 = arith.constant 1 : index
      %c1_80 = arith.constant 1 : index
      %c0_81 = arith.constant 0 : index
      %68 = vector.load %arg1[%c1_78, %c1_79, %c1_80, %c0_81] : memref<2x6x6x128xbf16, #tpu.memory_space<vmem>>, vector<1x4x4x128xbf16>
      %69 = vector.shape_cast %68 : vector<1x4x4x128xbf16> to vector<4x4x128xbf16>
      %70 = vector.shape_cast %69 : vector<4x4x128xbf16> to vector<16x128xbf16>
      %c16_82 = arith.constant 16 : index
      %c512_83 = arith.constant 512 : index
      %71 = vector.load %arg6[%c16_82, %c512_83] : memref<32x1152xbf16, #tpu.memory_space<vmem>>, vector<16x128xbf16>
      tpu.vector_store %arg6[%c16_82, %c512_83], %70 {strides = array<i32>} : memref<32x1152xbf16, #tpu.memory_space<vmem>>, vector<16x128xbf16>,
      %c1_84 = arith.constant 1 : index
      %c1_85 = arith.constant 1 : index
      %c2_86 = arith.constant 2 : index
      %c0_87 = arith.constant 0 : index
      %72 = vector.load %arg1[%c1_84, %c1_85, %c2_86, %c0_87] : memref<2x6x6x128xbf16, #tpu.memory_space<vmem>>, vector<1x4x4x128xbf16>
      %73 = vector.shape_cast %72 : vector<1x4x4x128xbf16> to vector<4x4x128xbf16>
      %74 = vector.shape_cast %73 : vector<4x4x128xbf16> to vector<16x128xbf16>
      %c16_88 = arith.constant 16 : index
      %c640_89 = arith.constant 640 : index
      %75 = vector.load %arg6[%c16_88, %c640_89] : memref<32x1152xbf16, #tpu.memory_space<vmem>>, vector<16x128xbf16>
      tpu.vector_store %arg6[%c16_88, %c640_89], %74 {strides = array<i32>} : memref<32x1152xbf16, #tpu.memory_space<vmem>>, vector<16x128xbf16>,
      %c1_90 = arith.constant 1 : index
      %c2_91 = arith.constant 2 : index
      %c0_92 = arith.constant 0 : index
      %c0_93 = arith.constant 0 : index
      %76 = vector.load %arg1[%c1_90, %c2_91, %c0_92, %c0_93] : memref<2x6x6x128xbf16, #tpu.memory_space<vmem>>, vector<1x4x4x128xbf16>
      %77 = vector.shape_cast %76 : vector<1x4x4x128xbf16> to vector<4x4x128xbf16>
      %78 = vector.shape_cast %77 : vector<4x4x128xbf16> to vector<16x128xbf16>
      %c16_94 = arith.constant 16 : index
      %c768_95 = arith.constant 768 : index
      %79 = vector.load %arg6[%c16_94, %c768_95] : memref<32x1152xbf16, #tpu.memory_space<vmem>>, vector<16x128xbf16>
      tpu.vector_store %arg6[%c16_94, %c768_95], %78 {strides = array<i32>} : memref<32x1152xbf16, #tpu.memory_space<vmem>>, vector<16x128xbf16>,
      %c1_96 = arith.constant 1 : index
      %c2_97 = arith.constant 2 : index
      %c1_98 = arith.constant 1 : index
      %c0_99 = arith.constant 0 : index
      %80 = vector.load %arg1[%c1_96, %c2_97, %c1_98, %c0_99] : memref<2x6x6x128xbf16, #tpu.memory_space<vmem>>, vector<1x4x4x128xbf16>
      %81 = vector.shape_cast %80 : vector<1x4x4x128xbf16> to vector<4x4x128xbf16>
      %82 = vector.shape_cast %81 : vector<4x4x128xbf16> to vector<16x128xbf16>
      %c16_100 = arith.constant 16 : index
      %c896_101 = arith.constant 896 : index
      %83 = vector.load %arg6[%c16_100, %c896_101] : memref<32x1152xbf16, #tpu.memory_space<vmem>>, vector<16x128xbf16>
      tpu.vector_store %arg6[%c16_100, %c896_101], %82 {strides = array<i32>} : memref<32x1152xbf16, #tpu.memory_space<vmem>>, vector<16x128xbf16>,
      %c1_102 = arith.constant 1 : index
      %c2_103 = arith.constant 2 : index
      %c2_104 = arith.constant 2 : index
      %c0_105 = arith.constant 0 : index
      %84 = vector.load %arg1[%c1_102, %c2_103, %c2_104, %c0_105] : memref<2x6x6x128xbf16, #tpu.memory_space<vmem>>, vector<1x4x4x128xbf16>
      %85 = vector.shape_cast %84 : vector<1x4x4x128xbf16> to vector<4x4x128xbf16>
      %86 = vector.shape_cast %85 : vector<4x4x128xbf16> to vector<16x128xbf16>
      %c16_106 = arith.constant 16 : index
      %c1024_107 = arith.constant 1024 : index
      %87 = vector.load %arg6[%c16_106, %c1024_107] : memref<32x1152xbf16, #tpu.memory_space<vmem>>, vector<16x128xbf16>
      tpu.vector_store %arg6[%c16_106, %c1024_107], %86 {strides = array<i32>} : memref<32x1152xbf16, #tpu.memory_space<vmem>>, vector<16x128xbf16>,
    } else {
    }
    %c0 = arith.constant 0 : index
    %c0_1 = arith.constant 0 : index
    %3 = vector.load %arg6[%c0, %c0_1] : memref<32x1152xbf16, #tpu.memory_space<vmem>>, vector<32x1152xbf16>
    %c0_2 = arith.constant 0 : index
    %c0_3 = arith.constant 0 : index
    %4 = vector.load %arg2[%c0_2, %c0_3] : memref<1152x256xbf16, #tpu.memory_space<vmem>>, vector<1152x256xbf16>
    %cst = arith.constant dense<0.000000e+00> : vector<32x256xf32>
    %5 = tpu.matmul %3, %4, %cst {dimension_numbers = #tpu.dot_dimension_numbers<[1], [0], [0], [1], [0, 0, 1, 1], [], []>} : vector<32x1152xbf16>, vector<1152x256xbf16>, vector<32x256xf32> -> vector<32x256xf32>
    %c0_4 = arith.constant 0 : index
    %c0_5 = arith.constant 0 : index
    %6 = vector.load %arg3[%c0_4, %c0_5] : memref<1x256xf32, #tpu.memory_space<vmem>>, vector<1x256xf32>
    %7 = vector.broadcast %6 : vector<1x256xf32> to vector<32x256xf32>
    %8 = arith.mulf %5, %7 : vector<32x256xf32>
    %c0_6 = arith.constant 0 : index
    %c0_7 = arith.constant 0 : index
    %9 = vector.load %arg4[%c0_6, %c0_7] : memref<1x256xf32, #tpu.memory_space<vmem>>, vector<1x256xf32>
    %10 = vector.broadcast %9 : vector<1x256xf32> to vector<32x256xf32>
    %11 = arith.addf %8, %10 : vector<32x256xf32>
    %cst_8 = arith.constant 0.000000e+00 : f32
    %12 = vector.broadcast %cst_8 : f32 to vector<32x256xf32>
    %13 = arith.maximumf %11, %12 : vector<32x256xf32>
    %14 = arith.truncf %13 : vector<32x256xf32> to vector<32x256xbf16>
    %c0_9 = arith.constant 0 : index
    %c0_10 = arith.constant 0 : index
    %15 = vector.load %arg5[%c0_9, %c0_10] : memref<32x256xbf16, #tpu.memory_space<vmem>>, vector<32x256xbf16>
    tpu.vector_store %arg5[%c0_9, %c0_10], %14 {strides = array<i32>} : memref<32x256xbf16, #tpu.memory_space<vmem>>, vector<32x256xbf16>,
    return
  }
  func.func @transform_0(%arg0: i32) -> (i32, i32, i32, i32) {
    %c0_i32 = arith.constant 0 : i32
    %c0_i32_0 = arith.constant 0 : i32
    %c0_i32_1 = arith.constant 0 : i32
    %c0_i32_2 = arith.constant 0 : i32
    %c0_i32_3 = arith.constant 0 : i32
    return %c0_i32, %c0_i32_0, %c0_i32_1, %c0_i32_2 : i32, i32, i32, i32
  }
  func.func @transform_1(%arg0: i32) -> (i32, i32) {
    %c0_i32 = arith.constant 0 : i32
    %c0_i32_0 = arith.constant 0 : i32
    return %c0_i32, %arg0 : i32, i32
  }
  func.func @transform_2(%arg0: i32) -> (i32, i32) {
    %c0_i32 = arith.constant 0 : i32
    %c0_i32_0 = arith.constant 0 : i32
    return %c0_i32, %arg0 : i32, i32
  }
  func.func @transform_3(%arg0: i32) -> (i32, i32) {
    %c0_i32 = arith.constant 0 : i32
    %c0_i32_0 = arith.constant 0 : i32
    return %c0_i32, %arg0 : i32, i32
  }
  func.func @transform_4(%arg0: i32) -> (i32, i32) {
    %c0_i32 = arith.constant 0 : i32
    %c0_i32_0 = arith.constant 0 : i32
    return %c0_i32, %arg0 : i32, i32
  }
}

</mosaic_0001>

<llo_original>
// kernel: tpu_custom_call.1
$region0: #{tpu_custom_call.1}
  #allocation0 [shape = 'u32[]', space=smem, size = 0x4, offset = 0x4, fixed_abs, tag = 'smem constant byte address 0x4 - core index']
  #allocation1 [shape = 'u32[144,128]{1,0:T(1,128)}', space=vmem, size = 0x12000, scoped, tag = 'internal scratch']
  #allocation2 [shape = 'bf16[32,1152]{1,0:T(16,128)(2,1)}', space=vmem, size = 0x12000, scoped, tag = 'scratch operand']
  %s0 = inlined_call_operand.vmem [shape: bf16[2,6,6,128], index: 0, kind: input, shape index: {}]
  %s1 = inlined_call_operand.hbm [shape: bf16[1152,512], index: 1, kind: input, shape index: {}]
  %s2 = inlined_call_operand.hbm [shape: f32[1,512], index: 2, kind: input, shape index: {}]
  %s3 = inlined_call_operand.hbm [shape: f32[1,512], index: 3, kind: input, shape index: {}]
  %s4 = inlined_call_operand.hbm [shape: bf16[32,512], index: 4, kind: output, shape index: {}]
  %s5 = sld [smem:[#allocation0]]
  $region65: #{tpu_custom_call.1} parent=0
    _
  %s7 = ssub.s32 1, %s5
  %s8 = scalar_select 0, %s7, %s5
  $region1: #{tpu_custom_call.1} parent=0
    #allocation3 [shape = 'u8[1179648]{0}', space=vmem, size = 0x120000, scoped, tag = 'input window, operand 1']
    #allocation4 [shape = 's32[2]{0}', space=sflag, size = 0x8, scoped, tag = 'scoped memory for tpu_custom_call.1']
    #allocation5 [shape = 's32[2]{0}', space=sflag, size = 0x8, scoped, tag = 'scoped memory for tpu_custom_call.1']
    #allocation6 [shape = 'u8[2048]{0}', space=vmem, size = 0x800, scoped, tag = 'input window, operand 2']
    #allocation7 [shape = 's32[2]{0}', space=sflag, size = 0x8, scoped, tag = 'scoped memory for tpu_custom_call.1']
    #allocation8 [shape = 'u8[2048]{0}', space=vmem, size = 0x800, scoped, tag = 'input window, operand 3']
    #allocation9 [shape = 'u8[32768]{0}', space=vmem, size = 0x8000, scoped, tag = 'output window, operand 0']
    %9 = vsyncpa [#allocation4], 0
    %s10 = scalar_lea.sflag [#allocation4], 1
    %11 = vsyncpa %s10, 0
    %12 = vsyncpa [#allocation7], 0
    %s13 = scalar_lea.sflag [#allocation7], 1
    %14 = vsyncpa %s13, 0
    %15 = vsyncpa [#allocation5], 0
    %s16 = scalar_lea.sflag [#allocation5], 1
    %17 = vsyncpa %s16, 0
    loop: start=0, step=1, limit=4
    $region2: #{tpu_custom_call.1} parent=1 // loop_pre_header
      _
    $region3: #{tpu_custom_call.1} parent=1 // loop_header
      %s19 = sphi 0, %s23
      %p20 = scmp.ge.s32.totalorder %s19, 4
      %s27 = sphi 0, %s27
      %s29 = sphi 0, %s27
      %s30 = sphi 0, %s29
      %s44 = sphi 0, %s30
      %s50 = sphi 0, %s52
      %s53 = sphi 0, %s50
      %s54 = sphi 0, %s53
      %s70 = sphi 0, %s54
      %s76 = sphi 0, %s78
      %s79 = sphi 0, %s76
      %s80 = sphi 0, %s79
      %s96 = sphi 0, %s80
      %s102 = sphi 0, %s104
      %s105 = sphi 0, %s102
      %s106 = sphi 0, %s105
      %s122 = sphi 0, %s106
      %s128 = sphi 0, %s130
      %s131 = sphi 0, %s128
      %s132 = sphi 0, %s131
      %s148 = sphi 0, %s132
    $region4: #{tpu_custom_call.1} parent=1 // loop_header_branch
      %22 = sbr.rel (%p20) target = $region8
    $region5: #{tpu_custom_call.1} parent=1 // loop_body
      %s24 = ssub.s32 %s19, 1
      %s25 = ssub.s32 %s19, 2
      %s26 = sadd.s32 %s19, 1
      %s28 = sadd.s32 %s27, 1
      %p31 = scmp.eq.s32.totalorder %s19, 1
      %p32 = scmp.ne.s32.totalorder %s27, %s29
      %p33 = scmp.eq.s32.totalorder %s19, 0
      %p34 = por %p32, %p33
      %p35 = scmp.ne.s32.totalorder %s27, %s29
      %p36 = scmp.eq.s32.totalorder %s24, 1
      %p37 = por %p35, %p36
      %p38 = scmp.ne.s32.totalorder %s29, %s30
      %p39 = scmp.eq.s32.totalorder %s24, 0
      %p40 = por %p38, %p39
      %p41 = scmp.ne.s32.totalorder %s29, %s30
      %p42 = scmp.eq.s32.totalorder %s25, 1
      %p43 = por %p41, %p42
      %p45 = scmp.ne.s32.totalorder %s30, %s44
      %p46 = scmp.eq.s32.totalorder %s25, 0
      %p47 = por %p45, %p46
      %s48 = ssub.s32 %s19, %s26
      %p49 = scmp.eq.s32.totalorder %s48, 0
      %s51 = sadd.s32 %s50, 1
      %s52 = scalar_select %p49, %s50, %s51
      %p55 = pneg %p49
      %p56 = scmp.eq.s32.totalorder %s19, 1
      %p57 = por %p55, %p56
      %p58 = scmp.ne.s32.totalorder %s50, %s53
      %p59 = scmp.eq.s32.totalorder %s19, 0
      %p60 = por %p58, %p59
      %p61 = scmp.ne.s32.totalorder %s50, %s53
      %p62 = scmp.eq.s32.totalorder %s24, 1
      %p63 = por %p61, %p62
      %p64 = scmp.ne.s32.totalorder %s53, %s54
      %p65 = scmp.eq.s32.totalorder %s24, 0
      %p66 = por %p64, %p65
      %p67 = scmp.ne.s32.totalorder %s53, %s54
      %p68 = scmp.eq.s32.totalorder %s25, 1
      %p69 = por %p67, %p68
      %p71 = scmp.ne.s32.totalorder %s54, %s70
      %p72 = scmp.eq.s32.totalorder %s25, 0
      %p73 = por %p71, %p72
      %s74 = ssub.s32 %s19, %s26
      %p75 = scmp.eq.s32.totalorder %s74, 0
      %s77 = sadd.s32 %s76, 1
      %s78 = scalar_select %p75, %s76, %s77
      %p81 = pneg %p75
      %p82 = scmp.eq.s32.totalorder %s19, 1
      %p83 = por %p81, %p82
      %p84 = scmp.ne.s32.totalorder %s76, %s79
      %p85 = scmp.eq.s32.totalorder %s19, 0
      %p86 = por %p84, %p85
      %p87 = scmp.ne.s32.totalorder %s76, %s79
      %p88 = scmp.eq.s32.totalorder %s24, 1
      %p89 = por %p87, %p88
      %p90 = scmp.ne.s32.totalorder %s79, %s80
      %p91 = scmp.eq.s32.totalorder %s24, 0
      %p92 = por %p90, %p91
      %p93 = scmp.ne.s32.totalorder %s79, %s80
      %p94 = scmp.eq.s32.totalorder %s25, 1
      %p95 = por %p93, %p94
      %p97 = scmp.ne.s32.totalorder %s80, %s96
      %p98 = scmp.eq.s32.totalorder %s25, 0
      %p99 = por %p97, %p98
      %s100 = ssub.s32 %s19, %s26
      %p101 = scmp.eq.s32.totalorder %s100, 0
      %s103 = sadd.s32 %s102, 1
      %s104 = scalar_select %p101, %s102, %s103
      %p107 = pneg %p101
      %p108 = scmp.eq.s32.totalorder %s19, 1
      %p109 = por %p107, %p108
      %p110 = scmp.ne.s32.totalorder %s102, %s105
      %p111 = scmp.eq.s32.totalorder %s19, 0
      %p112 = por %p110, %p111
      %p113 = scmp.ne.s32.totalorder %s102, %s105
      %p114 = scmp.eq.s32.totalorder %s24, 1
      %p115 = por %p113, %p114
      %p116 = scmp.ne.s32.totalorder %s105, %s106
      %p117 = scmp.eq.s32.totalorder %s24, 0
      %p118 = por %p116, %p117
      %p119 = scmp.ne.s32.totalorder %s105, %s106
      %p120 = scmp.eq.s32.totalorder %s25, 1
      %p121 = por %p119, %p120
      %p123 = scmp.ne.s32.totalorder %s106, %s122
      %p124 = scmp.eq.s32.totalorder %s25, 0
      %p125 = por %p123, %p124
      %s126 = ssub.s32 %s19, %s26
      %p127 = scmp.eq.s32.totalorder %s126, 0
      %s129 = sadd.s32 %s128, 1
      %s130 = scalar_select %p127, %s128, %s129
      %p133 = pneg %p127
      %p134 = scmp.eq.s32.totalorder %s19, 1
      %p135 = por %p133, %p134
      %p136 = scmp.ne.s32.totalorder %s128, %s131
      %p137 = scmp.eq.s32.totalorder %s19, 0
      %p138 = por %p136, %p137
      %p139 = scmp.ne.s32.totalorder %s128, %s131
      %p140 = scmp.eq.s32.totalorder %s24, 1
      %p141 = por %p139, %p140
      %p142 = scmp.ne.s32.totalorder %s131, %s132
      %p143 = scmp.eq.s32.totalorder %s24, 0
      %p144 = por %p142, %p143
      %p145 = scmp.ne.s32.totalorder %s131, %s132
      %p146 = scmp.eq.s32.totalorder %s25, 1
      %p147 = por %p145, %p146
      %p149 = scmp.ne.s32.totalorder %s132, %s148
      %p150 = scmp.eq.s32.totalorder %s25, 0
      %p151 = por %p149, %p150
      %p152 = scmp.le.s32.totalorder 1, %s19
      %p153 = scmp.lt.s32.totalorder %s19, 3
      %p154 = pnand %p152, %p153
      %p155 = pneg %p154
      // Predicated region
      $region9: #{tpu_custom_call.1} parent=5 // pred_check
        _
      $region10: #{tpu_custom_call.1} parent=5 // pred_check_branch
        %157 = sbr.rel (%p154) target = $region12
      $region11: #{tpu_custom_call.1} parent=5 // pred_region
        %s158 = ssub.s32 %s19, 1
        // Predicated region
        $region13: #{tpu_custom_call.1} parent=11 // pred_check
          %p159 = pneg %p40
        $region14: #{tpu_custom_call.1} parent=11 // pred_check_branch
          %161 = sbr.rel (%p159) target = $region16
        $region15: #{tpu_custom_call.1} parent=11 // pred_region
          _
        $region16: #{tpu_custom_call.1} parent=11 // pred_fallthru
          _
      $region12: #{tpu_custom_call.1} parent=5 // pred_fallthru
        _
      %p162 = scmp.lt.s32.totalorder %s19, 2
      // Predicated region
      $region17: #{tpu_custom_call.1} parent=5 // pred_check
        %p163 = pneg %p162
      $region18: #{tpu_custom_call.1} parent=5 // pred_check_branch
        %165 = sbr.rel (%p163) target = $region20
      $region19: #{tpu_custom_call.1} parent=5 // pred_region
        // Predicated region
        $region21: #{tpu_custom_call.1} parent=19 // pred_check
          %p166 = pneg %p60
        $region22: #{tpu_custom_call.1} parent=19 // pred_check_branch
          %168 = sbr.rel (%p166) target = $region24
        $region23: #{tpu_custom_call.1} parent=19 // pred_region
          %s169 = sand.u32 %s50, 1
          %s170 = scalar_lea.sflag [#allocation4], %s169
          %s171 = sand.u32 %s50, 1
          %s172 = smul.addr %s171, 1152
          %s173 = scalar_lea.vmem [#allocation3], %s172
          %s174 = smul.u32 2, %s19
          %s176 = ssub.s32 18432, 18432
          %177 = vsyncadd %s170, %s176
          %s178 = smul.addr %s174, 64
          %s179 = scalar_lea.hbm %s1, %s178
          %s180 = sshll.u32 %s173, 4
          %s181 = int_to_ptr.vmem [resolvable:$true] %s180
          %186 = dma.hbm_to_vmem [thread:$0]  %s179, 18432, %s181, %s170, 256, 128, 8
        $region24: #{tpu_custom_call.1} parent=19 // pred_fallthru
          _
        // Predicated region
        $region25: #{tpu_custom_call.1} parent=19 // pred_check
          %p187 = pneg %p86
        $region26: #{tpu_custom_call.1} parent=19 // pred_check_branch
          %189 = sbr.rel (%p187) target = $region28
        $region27: #{tpu_custom_call.1} parent=19 // pred_region
          %s190 = sand.u32 %s19, 1
          %s191 = scalar_lea.sflag [#allocation7], %s190
          %s192 = sand.u32 %s76, 1
          %s193 = smul.addr %s192, 2
          %s194 = scalar_lea.vmem [#allocation6], %s193
          %s195 = smul.u32 2, %s19
          %s197 = ssub.s32 32, 32
          %198 = vsyncadd %s191, %s197
          %s199 = smul.addr %s195, 16
          %s200 = scalar_lea.hbm %s2, %s199
          %s202 = sshll.u32 %s194, 4
          %s203 = int_to_ptr.vmem [resolvable:$true] %s202
          %205 = dma.hbm_to_vmem [thread:$0]  %s200, 32, %s203, %s191
        $region28: #{tpu_custom_call.1} parent=19 // pred_fallthru
          _
        // Predicated region
        $region29: #{tpu_custom_call.1} parent=19 // pred_check
          %p206 = pneg %p112
        $region30: #{tpu_custom_call.1} parent=19 // pred_check_branch
          %208 = sbr.rel (%p206) target = $region32
        $region31: #{tpu_custom_call.1} parent=19 // pred_region
          %s209 = sand.u32 %s19, 1
          %s210 = scalar_lea.sflag [#allocation7], %s209
          %s211 = sand.u32 %s102, 1
          %s212 = smul.addr %s211, 2
          %s213 = scalar_lea.vmem [#allocation8], %s212
          %s214 = smul.u32 2, %s19
          %s216 = ssub.s32 32, 32
          %217 = vsyncadd %s210, %s216
          %s218 = smul.addr %s214, 16
          %s219 = scalar_lea.hbm %s3, %s218
          %s221 = sshll.u32 %s213, 4
          %s222 = int_to_ptr.vmem [resolvable:$true] %s221
          %224 = dma.hbm_to_vmem [thread:$0]  %s219, 32, %s222, %s210
        $region32: #{tpu_custom_call.1} parent=19 // pred_fallthru
          _
      $region20: #{tpu_custom_call.1} parent=5 // pred_fallthru
        _
      %p225 = scmp.le.s32.totalorder 1, %s19
      %p226 = scmp.lt.s32.totalorder %s19, 3
      %p227 = pnand %p225, %p226
      %p228 = pneg %p227
      // Predicated region
      $region33: #{tpu_custom_call.1} parent=5 // pred_check
        _
      $region34: #{tpu_custom_call.1} parent=5 // pred_check_branch
        %230 = sbr.rel (%p227) target = $region36
      $region35: #{tpu_custom_call.1} parent=5 // pred_region
        %s231 = ssub.s32 %s19, 1
        %s232 = sand.u32 %s53, 1
        %s233 = scalar_lea.sflag [#allocation4], %s232
        %s234 = sand.u32 %s53, 1
        %s235 = smul.addr %s234, 1152
        %s236 = scalar_lea.vmem [#allocation3], %s235
        // Predicated region
        $region37: #{tpu_custom_call.1} parent=35 // pred_check
          %p237 = pneg %p66
        $region38: #{tpu_custom_call.1} parent=35 // pred_check_branch
          %239 = sbr.rel (%p237) target = $region40
        $region39: #{tpu_custom_call.1} parent=35 // pred_region
          %240 = dma.done %s233, 18432
        $region40: #{tpu_custom_call.1} parent=35 // pred_fallthru
          _
        %s241 = sand.u32 %s24, 1
        %s242 = scalar_lea.sflag [#allocation7], %s241
        %s243 = sand.u32 %s79, 1
        %s244 = smul.addr %s243, 2
        %s245 = scalar_lea.vmem [#allocation6], %s244
        // Predicated region
        $region41: #{tpu_custom_call.1} parent=35 // pred_check
          %p246 = pneg %p92
        $region42: #{tpu_custom_call.1} parent=35 // pred_check_branch
          %248 = sbr.rel (%p246) target = $region44
        $region43: #{tpu_custom_call.1} parent=35 // pred_region
          %249 = dma.done %s242, 32
        $region44: #{tpu_custom_call.1} parent=35 // pred_fallthru
          _
        %s250 = sand.u32 %s24, 1
        %s251 = scalar_lea.sflag [#allocation7], %s250
        %s252 = sand.u32 %s105, 1
        %s253 = smul.addr %s252, 2
        %s254 = scalar_lea.vmem [#allocation8], %s253
        // Predicated region
        $region45: #{tpu_custom_call.1} parent=35 // pred_check
          %p255 = pneg %p118
        $region46: #{tpu_custom_call.1} parent=35 // pred_check_branch
          %257 = sbr.rel (%p255) target = $region48
        $region47: #{tpu_custom_call.1} parent=35 // pred_region
          %258 = dma.done %s251, 32
        $region48: #{tpu_custom_call.1} parent=35 // pred_fallthru
          _
        %p259 = pneg %p40
        %p260 = pneg %p37
        %s261 = sand.u32 %s53, 1
        %s262 = scalar_lea.sflag [#allocation4], %s261
        %s263 = sand.u32 %s53, 1
        %s264 = smul.addr %s263, 1152
        %s265 = scalar_lea.vmem [#allocation3], %s264
        %p266 = pneg %p66
        %p267 = pneg %p63
        %s268 = sand.u32 %s24, 1
        %s269 = scalar_lea.sflag [#allocation7], %s268
        %s270 = sand.u32 %s79, 1
        %s271 = smul.addr %s270, 2
        %s272 = scalar_lea.vmem [#allocation6], %s271
        %p273 = pneg %p92
        %p274 = pneg %p89
        %s275 = sand.u32 %s24, 1
        %s276 = scalar_lea.sflag [#allocation7], %s275
        %s277 = sand.u32 %s105, 1
        %s278 = smul.addr %s277, 2
        %s279 = scalar_lea.vmem [#allocation8], %s278
        %p280 = pneg %p118
        %p281 = pneg %p115
        %p282 = pneg %p144
        %p283 = pneg %p141
        %s284 = sand.u32 %s131, 1
        %s285 = scalar_lea.sflag [#allocation5], %s284
        %s286 = sand.u32 %s131, 1
        %s287 = smul.addr %s286, 32
        %s288 = scalar_lea.vmem [#allocation9], %s287
        %s289 = smul.u32 2, %s24
        %s290 = smul.u32 2, %s24
        %s291 = smul.u32 2, %s24
        %s292 = smul.u32 2, %s24
        %p294 = scmp.eq.s32.totalorder %s24, 0
        // Predicated region
        $region49: #{tpu_custom_call.1} parent=35 // pred_check
          %p295 = pneg %p294
        $region50: #{tpu_custom_call.1} parent=35 // pred_check_branch
          %297 = sbr.rel (%p295) target = $region52
        $region51: #{tpu_custom_call.1} parent=35 // pred_region
          %v298 = vld [vmem:[%s0] sm:$0x3]
          %v299 = vld [vmem:[%s0 + $0x4] sm:$0x3]
          %v300 = vld [vmem:[%s0 + $0x8] sm:$0x3]
          %v301 = vld [vmem:[%s0 + $0xc] sm:$0x3]
          %v306 = vcombine.low %v298, %v299
          %v307 = vcombine.low %v300, %v301
          %v309 = vunpack.c.l.s4 1983009808
          %v310 = vunpack.c.0.s8 %v309
          %v311 = vlaneseq
          %v312 = vshrl.u32 %v311, 7
          %v313 = vsub.s32 %v310, %v312
          %v314 = vrot.slane %v306, %v313
          %v316 = vunpack.c.l.s4 1983009808
          %v317 = vunpack.c.0.s8 %v316
          %v318 = vlaneseq
          %v319 = vshrl.u32 %v318, 7
          %v320 = vsub.s32 %v317, %v319
          %v321 = vrot.slane %v307, %v320
          %v322 = vcombine.low %v314, %v321
          %324 = vst [vmem:[#allocation2] sm:$0xff] %v322
          %v325 = vld [vmem:[%s0] sm:$0x7]
          %v326 = vld [vmem:[%s0 + $0x4] sm:$0x7]
          %v327 = vld [vmem:[%s0 + $0x8] sm:$0x7]
          %v328 = vld [vmem:[%s0 + $0xc] sm:$0x7]
          %v334 = vunpack.c.l.s4 1983009808
          %v335 = vunpack.c.0.s8 %v334
          %v336 = vlaneseq
          %v337 = vshrl.u32 %v336, 7
          %v338 = vsub.s32 %v335, %v337
          %v339 = vrot.slane %v325, %v338
          %v340 = vcombine.high %v339, %v339
          %v342 = vunpack.c.l.s4 1983009808
          %v343 = vunpack.c.0.s8 %v342
          %v344 = vlaneseq
          %v345 = vshrl.u32 %v344, 7
          %v346 = vsub.s32 %v343, %v345
          %v347 = vrot.slane %v326, %v346
          %v348 = vcombine.high %v347, %v347
          %v350 = vunpack.c.l.s4 1983009808
          %v351 = vunpack.c.0.s8 %v350
          %v352 = vlaneseq
          %v353 = vshrl.u32 %v352, 7
          %v354 = vsub.s32 %v351, %v353
          %v355 = vrot.slane %v327, %v354
          %v356 = vcombine.high %v355, %v355
          %v358 = vunpack.c.l.s4 1983009808
          %v359 = vunpack.c.0.s8 %v358
          %v360 = vlaneseq
          %v361 = vshrl.u32 %v360, 7
          %v362 = vsub.s32 %v359, %v361
          %v363 = vrot.slane %v328, %v362
          %v364 = vcombine.high %v363, %v363
          %vm365 = vsmask.f32 1280
          %vm366 = vsmask.f32 3336
          %vm367 = vmor %vm365, %vm366
          %vm368 = vsmask.f32 5392
          %vm369 = vmor %vm367, %vm368
          %vm370 = vsmask.f32 7448
          %vm371 = vmor %vm369, %vm370
          %v373 = vshrl.u32 %v339, 16
          %v375 = vrot.slane %v373, 6
          %v376 = vshll.u32 %v339, 16
          %v378 = vrot.slane %v376, 7
          %v379 = vor.u32 %v375, %v378
          %v380 = vrot.slane %v379, 2
          %v382 = vshll.u32 %v340, 16
          %v384 = vrot.slane %v382, 7
          %v385 = vsel %vm371, %v380, %v384
          %v387 = vshrl.u32 %v347, 16
          %v389 = vrot.slane %v387, 6
          %v390 = vshll.u32 %v347, 16
          %v392 = vrot.slane %v390, 7
          %v393 = vor.u32 %v389, %v392
          %v394 = vrot.slane %v393, 2
          %v396 = vshll.u32 %v348, 16
          %v398 = vrot.slane %v396, 7
          %v399 = vsel %vm371, %v394, %v398
          %v401 = vshrl.u32 %v355, 16
          %v403 = vrot.slane %v401, 6
          %v404 = vshll.u32 %v355, 16
          %v406 = vrot.slane %v404, 7
          %v407 = vor.u32 %v403, %v406
          %v408 = vrot.slane %v407, 2
          %v410 = vshll.u32 %v356, 16
          %v412 = vrot.slane %v410, 7
          %v413 = vsel %vm371, %v408, %v412
          %v415 = vshrl.u32 %v363, 16
          %v417 = vrot.slane %v415, 6
          %v418 = vshll.u32 %v363, 16
          %v420 = vrot.slane %v418, 7
          %v421 = vor.u32 %v417, %v420
          %v422 = vrot.slane %v421, 2
          %v424 = vshll.u32 %v364, 16
          %v426 = vrot.slane %v424, 7
          %v427 = vsel %vm371, %v422, %v426
          %v428 = vcombine.low %v385, %v399
          %v429 = vcombine.low %v413, %v427
          %v431 = vunpack.c.l.s4 1983009808
          %v432 = vunpack.c.0.s8 %v431
          %v433 = vlaneseq
          %v434 = vshrl.u32 %v433, 7
          %v435 = vsub.s32 %v432, %v434
          %v436 = vrot.slane %v428, %v435
          %v438 = vunpack.c.l.s4 1983009808
          %v439 = vunpack.c.0.s8 %v438
          %v440 = vlaneseq
          %v441 = vshrl.u32 %v440, 7
          %v442 = vsub.s32 %v439, %v441
          %v443 = vrot.slane %v429, %v442
          %v444 = vcombine.low %v436, %v443
          %446 = vst [vmem:[#allocation2 + $0x8] sm:$0xff] %v444
          %v447 = vld [vmem:[%s0] sm:$0x6]
          %v448 = vld [vmem:[%s0 + $0x4] sm:$0x6]
          %v449 = vld [vmem:[%s0 + $0x8] sm:$0x6]
          %v450 = vld [vmem:[%s0 + $0xc] sm:$0x6]
          %v456 = vunpack.c.l.s4 1983009808
          %v457 = vunpack.c.0.s8 %v456
          %v458 = vlaneseq
          %v459 = vshrl.u32 %v458, 7
          %v460 = vsub.s32 %v457, %v459
          %v461 = vrot.slane %v447, %v460
          %v462 = vcombine.high %v461, %v461
          %v464 = vunpack.c.l.s4 1983009808
          %v465 = vunpack.c.0.s8 %v464
          %v466 = vlaneseq
          %v467 = vshrl.u32 %v466, 7
          %v468 = vsub.s32 %v465, %v467
          %v469 = vrot.slane %v448, %v468
          %v470 = vcombine.high %v469, %v469
          %v472 = vunpack.c.l.s4 1983009808
          %v473 = vunpack.c.0.s8 %v472
          %v474 = vlaneseq
          %v475 = vshrl.u32 %v474, 7
          %v476 = vsub.s32 %v473, %v475
          %v477 = vrot.slane %v449, %v476
          %v478 = vcombine.high %v477, %v477
          %v480 = vunpack.c.l.s4 1983009808
          %v481 = vunpack.c.0.s8 %v480
          %v482 = vlaneseq
          %v483 = vshrl.u32 %v482, 7
          %v484 = vsub.s32 %v481, %v483
          %v485 = vrot.slane %v450, %v484
          %v486 = vcombine.high %v485, %v485
          %vm487 = vcmask 1040384
          %vm488 = vcmask 1042434
          %vm489 = vmor %vm487, %vm488
          %vm490 = vcmask 1044484
          %vm491 = vmor %vm489, %vm490
          %vm492 = vcmask 1046534
          %vm493 = vmor %vm491, %vm492
          %v494 = vrot.slane %v461, 7
          %v495 = vrot.slane %v494, 2
          %v496 = vrot.slane %v462, 7
          %v497 = vsel %vm493, %v495, %v496
          %v498 = vrot.slane %v469, 7
          %v499 = vrot.slane %v498, 2
          %v500 = vrot.slane %v470, 7
          %v501 = vsel %vm493, %v499, %v500
          %v502 = vrot.slane %v477, 7
          %v503 = vrot.slane %v502, 2
          %v504 = vrot.slane %v478, 7
          %v505 = vsel %vm493, %v503, %v504
          %v506 = vrot.slane %v485, 7
          %v507 = vrot.slane %v506, 2
          %v508 = vrot.slane %v486, 7
          %v509 = vsel %vm493, %v507, %v508
          %v510 = vcombine.low %v497, %v501
          %v511 = vcombine.low %v505, %v509
          %v513 = vunpack.c.l.s4 1983009808
          %v514 = vunpack.c.0.s8 %v513
          %v515 = vlaneseq
          %v516 = vshrl.u32 %v515, 7
          %v517 = vsub.s32 %v514, %v516
          %v518 = vrot.slane %v510, %v517
          %v520 = vunpack.c.l.s4 1983009808
          %v521 = vunpack.c.0.s8 %v520
          %v522 = vlaneseq
          %v523 = vshrl.u32 %v522, 7
          %v524 = vsub.s32 %v521, %v523
          %v525 = vrot.slane %v511, %v524
          %v526 = vcombine.low %v518, %v525
          %528 = vst [vmem:[#allocation2 + $0x10] sm:$0xff] %v526
          %s529 = scalar_lea.vmem %s0, 4
          %v530 = vld [vmem:[%s529] sm:$0x3]
          %v531 = vld [vmem:[%s529 + $0x4] sm:$0x3]
          %v532 = vld [vmem:[%s529 + $0x8] sm:$0x3]
          %v533 = vld [vmem:[%s529 + $0xc] sm:$0x3]
          %v538 = vcombine.low %v530, %v531
          %v539 = vcombine.low %v532, %v533
          %v541 = vunpack.c.l.s4 1983009808
          %v542 = vunpack.c.0.s8 %v541
          %v543 = vlaneseq
          %v544 = vshrl.u32 %v543, 7
          %v545 = vsub.s32 %v542, %v544
          %v546 = vrot.slane %v538, %v545
          %v548 = vunpack.c.l.s4 1983009808
          %v549 = vunpack.c.0.s8 %v548
          %v550 = vlaneseq
          %v551 = vshrl.u32 %v550, 7
          %v552 = vsub.s32 %v549, %v551
          %v553 = vrot.slane %v539, %v552
          %v554 = vcombine.low %v546, %v553
          %556 = vst [vmem:[#allocation2 + $0x18] sm:$0xff] %v554
          %v557 = vld [vmem:[%s529] sm:$0x7]
          %v558 = vld [vmem:[%s529 + $0x4] sm:$0x7]
          %v559 = vld [vmem:[%s529 + $0x8] sm:$0x7]
          %v560 = vld [vmem:[%s529 + $0xc] sm:$0x7]
          %v566 = vunpack.c.l.s4 1983009808
          %v567 = vunpack.c.0.s8 %v566
          %v568 = vlaneseq
          %v569 = vshrl.u32 %v568, 7
          %v570 = vsub.s32 %v567, %v569
          %v571 = vrot.slane %v557, %v570
          %v572 = vcombine.high %v571, %v571
          %v574 = vunpack.c.l.s4 1983009808
          %v575 = vunpack.c.0.s8 %v574
          %v576 = vlaneseq
          %v577 = vshrl.u32 %v576, 7
          %v578 = vsub.s32 %v575, %v577
          %v579 = vrot.slane %v558, %v578
          %v580 = vcombine.high %v579, %v579
          %v582 = vunpack.c.l.s4 1983009808
          %v583 = vunpack.c.0.s8 %v582
          %v584 = vlaneseq
          %v585 = vshrl.u32 %v584, 7
          %v586 = vsub.s32 %v583, %v585
          %v587 = vrot.slane %v559, %v586
          %v588 = vcombine.high %v587, %v587
          %v590 = vunpack.c.l.s4 1983009808
          %v591 = vunpack.c.0.s8 %v590
          %v592 = vlaneseq
          %v593 = vshrl.u32 %v592, 7
          %v594 = vsub.s32 %v591, %v593
          %v595 = vrot.slane %v560, %v594
          %v596 = vcombine.high %v595, %v595
          %v598 = vshrl.u32 %v571, 16
          %v600 = vrot.slane %v598, 6
          %v601 = vshll.u32 %v571, 16
          %v603 = vrot.slane %v601, 7
          %v604 = vor.u32 %v600, %v603
          %v605 = vrot.slane %v604, 2
          %v607 = vshll.u32 %v572, 16
          %v609 = vrot.slane %v607, 7
          %v610 = vsel %vm371, %v605, %v609
          %v612 = vshrl.u32 %v579, 16
          %v614 = vrot.slane %v612, 6
          %v615 = vshll.u32 %v579, 16
          %v617 = vrot.slane %v615, 7
          %v618 = vor.u32 %v614, %v617
          %v619 = vrot.slane %v618, 2
          %v621 = vshll.u32 %v580, 16
          %v623 = vrot.slane %v621, 7
          %v624 = vsel %vm371, %v619, %v623
          %v626 = vshrl.u32 %v587, 16
          %v628 = vrot.slane %v626, 6
          %v629 = vshll.u32 %v587, 16
          %v631 = vrot.slane %v629, 7
          %v632 = vor.u32 %v628, %v631
          %v633 = vrot.slane %v632, 2
          %v635 = vshll.u32 %v588, 16
          %v637 = vrot.slane %v635, 7
          %v638 = vsel %vm371, %v633, %v637
          %v640 = vshrl.u32 %v595, 16
          %v642 = vrot.slane %v640, 6
          %v643 = vshll.u32 %v595, 16
          %v645 = vrot.slane %v643, 7
          %v646 = vor.u32 %v642, %v645
          %v647 = vrot.slane %v646, 2
          %v649 = vshll.u32 %v596, 16
          %v651 = vrot.slane %v649, 7
          %v652 = vsel %vm371, %v647, %v651
          %v653 = vcombine.low %v610, %v624
          %v654 = vcombine.low %v638, %v652
          %v656 = vunpack.c.l.s4 1983009808
          %v657 = vunpack.c.0.s8 %v656
          %v658 = vlaneseq
          %v659 = vshrl.u32 %v658, 7
          %v660 = vsub.s32 %v657, %v659
          %v661 = vrot.slane %v653, %v660
          %v663 = vunpack.c.l.s4 1983009808
          %v664 = vunpack.c.0.s8 %v663
          %v665 = vlaneseq
          %v666 = vshrl.u32 %v665, 7
          %v667 = vsub.s32 %v664, %v666
          %v668 = vrot.slane %v654, %v667
          %v669 = vcombine.low %v661, %v668
          %671 = vst [vmem:[#allocation2 + $0x20] sm:$0xff] %v669
          %v672 = vld [vmem:[%s529] sm:$0x6]
          %v673 = vld [vmem:[%s529 + $0x4] sm:$0x6]
          %v674 = vld [vmem:[%s529 + $0x8] sm:$0x6]
          %v675 = vld [vmem:[%s529 + $0xc] sm:$0x6]
          %v681 = vunpack.c.l.s4 1983009808
          %v682 = vunpack.c.0.s8 %v681
          %v683 = vlaneseq
          %v684 = vshrl.u32 %v683, 7
          %v685 = vsub.s32 %v682, %v684
          %v686 = vrot.slane %v672, %v685
          %v687 = vcombine.high %v686, %v686
          %v689 = vunpack.c.l.s4 1983009808
          %v690 = vunpack.c.0.s8 %v689
          %v691 = vlaneseq
          %v692 = vshrl.u32 %v691, 7
          %v693 = vsub.s32 %v690, %v692
          %v694 = vrot.slane %v673, %v693
          %v695 = vcombine.high %v694, %v694
          %v697 = vunpack.c.l.s4 1983009808
          %v698 = vunpack.c.0.s8 %v697
          %v699 = vlaneseq
          %v700 = vshrl.u32 %v699, 7
          %v701 = vsub.s32 %v698, %v700
          %v702 = vrot.slane %v674, %v701
          %v703 = vcombine.high %v702, %v702
          %v705 = vunpack.c.l.s4 1983009808
          %v706 = vunpack.c.0.s8 %v705
          %v707 = vlaneseq
          %v708 = vshrl.u32 %v707, 7
          %v709 = vsub.s32 %v706, %v708
          %v710 = vrot.slane %v675, %v709
          %v711 = vcombine.high %v710, %v710
          %v712 = vrot.slane %v686, 7
          %v713 = vrot.slane %v712, 2
          %v714 = vrot.slane %v687, 7
          %v715 = vsel %vm493, %v713, %v714
          %v716 = vrot.slane %v694, 7
          %v717 = vrot.slane %v716, 2
          %v718 = vrot.slane %v695, 7
          %v719 = vsel %vm493, %v717, %v718
          %v720 = vrot.slane %v702, 7
          %v721 = vrot.slane %v720, 2
          %v722 = vrot.slane %v703, 7
          %v723 = vsel %vm493, %v721, %v722
          %v724 = vrot.slane %v710, 7
          %v725 = vrot.slane %v724, 2
          %v726 = vrot.slane %v711, 7
          %v727 = vsel %vm493, %v725, %v726
          %v728 = vcombine.low %v715, %v719
          %v729 = vcombine.low %v723, %v727
          %v731 = vunpack.c.l.s4 1983009808
          %v732 = vunpack.c.0.s8 %v731
          %v733 = vlaneseq
          %v734 = vshrl.u32 %v733, 7
          %v735 = vsub.s32 %v732, %v734
          %v736 = vrot.slane %v728, %v735
          %v738 = vunpack.c.l.s4 1983009808
          %v739 = vunpack.c.0.s8 %v738
          %v740 = vlaneseq
          %v741 = vshrl.u32 %v740, 7
          %v742 = vsub.s32 %v739, %v741
          %v743 = vrot.slane %v729, %v742
          %v744 = vcombine.low %v736, %v743
          %746 = vst [vmem:[#allocation2 + $0x28] sm:$0xff] %v744
          %s747 = scalar_lea.vmem %s0, 8
          %v748 = vld [vmem:[%s747] sm:$0x3]
          %v749 = vld [vmem:[%s747 + $0x4] sm:$0x3]
          %v750 = vld [vmem:[%s747 + $0x8] sm:$0x3]
          %v751 = vld [vmem:[%s747 + $0xc] sm:$0x3]
          %v756 = vcombine.low %v748, %v749
          %v757 = vcombine.low %v750, %v751
          %v759 = vunpack.c.l.s4 1983009808
          %v760 = vunpack.c.0.s8 %v759
          %v761 = vlaneseq
          %v762 = vshrl.u32 %v761, 7
          %v763 = vsub.s32 %v760, %v762
          %v764 = vrot.slane %v756, %v763
          %v766 = vunpack.c.l.s4 1983009808
          %v767 = vunpack.c.0.s8 %v766
          %v768 = vlaneseq
          %v769 = vshrl.u32 %v768, 7
          %v770 = vsub.s32 %v767, %v769
          %v771 = vrot.slane %v757, %v770
          %v772 = vcombine.low %v764, %v771
          %774 = vst [vmem:[#allocation2 + $0x30] sm:$0xff] %v772
          %v775 = vld [vmem:[%s747] sm:$0x7]
          %v776 = vld [vmem:[%s747 + $0x4] sm:$0x7]
          %v777 = vld [vmem:[%s747 + $0x8] sm:$0x7]
          %v778 = vld [vmem:[%s747 + $0xc] sm:$0x7]
          %v784 = vunpack.c.l.s4 1983009808
          %v785 = vunpack.c.0.s8 %v784
          %v786 = vlaneseq
          %v787 = vshrl.u32 %v786, 7
          %v788 = vsub.s32 %v785, %v787
          %v789 = vrot.slane %v775, %v788
          %v790 = vcombine.high %v789, %v789
          %v792 = vunpack.c.l.s4 1983009808
          %v793 = vunpack.c.0.s8 %v792
          %v794 = vlaneseq
          %v795 = vshrl.u32 %v794, 7
          %v796 = vsub.s32 %v793, %v795
          %v797 = vrot.slane %v776, %v796
          %v798 = vcombine.high %v797, %v797
          %v800 = vunpack.c.l.s4 1983009808
          %v801 = vunpack.c.0.s8 %v800
          %v802 = vlaneseq
          %v803 = vshrl.u32 %v802, 7
          %v804 = vsub.s32 %v801, %v803
          %v805 = vrot.slane %v777, %v804
          %v806 = vcombine.high %v805, %v805
          %v808 = vunpack.c.l.s4 1983009808
          %v809 = vunpack.c.0.s8 %v808
          %v810 = vlaneseq
          %v811 = vshrl.u32 %v810, 7
          %v812 = vsub.s32 %v809, %v811
          %v813 = vrot.slane %v778, %v812
          %v814 = vcombine.high %v813, %v813
          %v816 = vshrl.u32 %v789, 16
          %v818 = vrot.slane %v816, 6
          %v819 = vshll.u32 %v789, 16
          %v821 = vrot.slane %v819, 7
          %v822 = vor.u32 %v818, %v821
          %v823 = vrot.slane %v822, 2
          %v825 = vshll.u32 %v790, 16
          %v827 = vrot.slane %v825, 7
          %v828 = vsel %vm371, %v823, %v827
          %v830 = vshrl.u32 %v797, 16
          %v832 = vrot.slane %v830, 6
          %v833 = vshll.u32 %v797, 16
          %v835 = vrot.slane %v833, 7
          %v836 = vor.u32 %v832, %v835
          %v837 = vrot.slane %v836, 2
          %v839 = vshll.u32 %v798, 16
          %v841 = vrot.slane %v839, 7
          %v842 = vsel %vm371, %v837, %v841
          %v844 = vshrl.u32 %v805, 16
          %v846 = vrot.slane %v844, 6
          %v847 = vshll.u32 %v805, 16
          %v849 = vrot.slane %v847, 7
          %v850 = vor.u32 %v846, %v849
          %v851 = vrot.slane %v850, 2
          %v853 = vshll.u32 %v806, 16
          %v855 = vrot.slane %v853, 7
          %v856 = vsel %vm371, %v851, %v855
          %v858 = vshrl.u32 %v813, 16
          %v860 = vrot.slane %v858, 6
          %v861 = vshll.u32 %v813, 16
          %v863 = vrot.slane %v861, 7
          %v864 = vor.u32 %v860, %v863
          %v865 = vrot.slane %v864, 2
          %v867 = vshll.u32 %v814, 16
          %v869 = vrot.slane %v867, 7
          %v870 = vsel %vm371, %v865, %v869
          %v871 = vcombine.low %v828, %v842
          %v872 = vcombine.low %v856, %v870
          %v874 = vunpack.c.l.s4 1983009808
          %v875 = vunpack.c.0.s8 %v874
          %v876 = vlaneseq
          %v877 = vshrl.u32 %v876, 7
          %v878 = vsub.s32 %v875, %v877
          %v879 = vrot.slane %v871, %v878
          %v881 = vunpack.c.l.s4 1983009808
          %v882 = vunpack.c.0.s8 %v881
          %v883 = vlaneseq
          %v884 = vshrl.u32 %v883, 7
          %v885 = vsub.s32 %v882, %v884
          %v886 = vrot.slane %v872, %v885
          %v887 = vcombine.low %v879, %v886
          %889 = vst [vmem:[#allocation2 + $0x38] sm:$0xff] %v887
          %v890 = vld [vmem:[%s747] sm:$0x6]
          %v891 = vld [vmem:[%s747 + $0x4] sm:$0x6]
          %v892 = vld [vmem:[%s747 + $0x8] sm:$0x6]
          %v893 = vld [vmem:[%s747 + $0xc] sm:$0x6]
          %v899 = vunpack.c.l.s4 1983009808
          %v900 = vunpack.c.0.s8 %v899
          %v901 = vlaneseq
          %v902 = vshrl.u32 %v901, 7
          %v903 = vsub.s32 %v900, %v902
          %v904 = vrot.slane %v890, %v903
          %v905 = vcombine.high %v904, %v904
          %v907 = vunpack.c.l.s4 1983009808
          %v908 = vunpack.c.0.s8 %v907
          %v909 = vlaneseq
          %v910 = vshrl.u32 %v909, 7
          %v911 = vsub.s32 %v908, %v910
          %v912 = vrot.slane %v891, %v911
          %v913 = vcombine.high %v912, %v912
          %v915 = vunpack.c.l.s4 1983009808
          %v916 = vunpack.c.0.s8 %v915
          %v917 = vlaneseq
          %v918 = vshrl.u32 %v917, 7
          %v919 = vsub.s32 %v916, %v918
          %v920 = vrot.slane %v892, %v919
          %v921 = vcombine.high %v920, %v920
          %v923 = vunpack.c.l.s4 1983009808
          %v924 = vunpack.c.0.s8 %v923
          %v925 = vlaneseq
          %v926 = vshrl.u32 %v925, 7
          %v927 = vsub.s32 %v924, %v926
          %v928 = vrot.slane %v893, %v927
          %v929 = vcombine.high %v928, %v928
          %v930 = vrot.slane %v904, 7
          %v931 = vrot.slane %v930, 2
          %v932 = vrot.slane %v905, 7
          %v933 = vsel %vm493, %v931, %v932
          %v934 = vrot.slane %v912, 7
          %v935 = vrot.slane %v934, 2
          %v936 = vrot.slane %v913, 7
          %v937 = vsel %vm493, %v935, %v936
          %v938 = vrot.slane %v920, 7
          %v939 = vrot.slane %v938, 2
          %v940 = vrot.slane %v921, 7
          %v941 = vsel %vm493, %v939, %v940
          %v942 = vrot.slane %v928, 7
          %v943 = vrot.slane %v942, 2
          %v944 = vrot.slane %v929, 7
          %v945 = vsel %vm493, %v943, %v944
          %v946 = vcombine.low %v933, %v937
          %v947 = vcombine.low %v941, %v945
          %v949 = vunpack.c.l.s4 1983009808
          %v950 = vunpack.c.0.s8 %v949
          %v951 = vlaneseq
          %v952 = vshrl.u32 %v951, 7
          %v953 = vsub.s32 %v950, %v952
          %v954 = vrot.slane %v946, %v953
          %v956 = vunpack.c.l.s4 1983009808
          %v957 = vunpack.c.0.s8 %v956
          %v958 = vlaneseq
          %v959 = vshrl.u32 %v958, 7
          %v960 = vsub.s32 %v957, %v959
          %v961 = vrot.slane %v947, %v960
          %v962 = vcombine.low %v954, %v961
          %964 = vst [vmem:[#allocation2 + $0x40] sm:$0xff] %v962
          %s965 = scalar_lea.vmem %s0, 24
          %v966 = vld [vmem:[%s965] sm:$0x3]
          %v967 = vld [vmem:[%s965 + $0x4] sm:$0x3]
          %v968 = vld [vmem:[%s965 + $0x8] sm:$0x3]
          %v969 = vld [vmem:[%s965 + $0xc] sm:$0x3]
          %v974 = vcombine.low %v966, %v967
          %v975 = vcombine.low %v968, %v969
          %v977 = vunpack.c.l.s4 1983009808
          %v978 = vunpack.c.0.s8 %v977
          %v979 = vlaneseq
          %v980 = vshrl.u32 %v979, 7
          %v981 = vsub.s32 %v978, %v980
          %v982 = vrot.slane %v974, %v981
          %v984 = vunpack.c.l.s4 1983009808
          %v985 = vunpack.c.0.s8 %v984
          %v986 = vlaneseq
          %v987 = vshrl.u32 %v986, 7
          %v988 = vsub.s32 %v985, %v987
          %v989 = vrot.slane %v975, %v988
          %v990 = vcombine.low %v982, %v989
          %992 = vst [vmem:[#allocation2 + $0x48] sm:$0xff] %v990
          %v993 = vld [vmem:[%s965] sm:$0x7]
          %v994 = vld [vmem:[%s965 + $0x4] sm:$0x7]
          %v995 = vld [vmem:[%s965 + $0x8] sm:$0x7]
          %v996 = vld [vmem:[%s965 + $0xc] sm:$0x7]
          %v1002 = vunpack.c.l.s4 1983009808
          %v1003 = vunpack.c.0.s8 %v1002
          %v1004 = vlaneseq
          %v1005 = vshrl.u32 %v1004, 7
          %v1006 = vsub.s32 %v1003, %v1005
          %v1007 = vrot.slane %v993, %v1006
          %v1008 = vcombine.high %v1007, %v1007
          %v1010 = vunpack.c.l.s4 1983009808
          %v1011 = vunpack.c.0.s8 %v1010
          %v1012 = vlaneseq
          %v1013 = vshrl.u32 %v1012, 7
          %v1014 = vsub.s32 %v1011, %v1013
          %v1015 = vrot.slane %v994, %v1014
          %v1016 = vcombine.high %v1015, %v1015
          %v1018 = vunpack.c.l.s4 1983009808
          %v1019 = vunpack.c.0.s8 %v1018
          %v1020 = vlaneseq
          %v1021 = vshrl.u32 %v1020, 7
          %v1022 = vsub.s32 %v1019, %v1021
          %v1023 = vrot.slane %v995, %v1022
          %v1024 = vcombine.high %v1023, %v1023
          %v1026 = vunpack.c.l.s4 1983009808
          %v1027 = vunpack.c.0.s8 %v1026
          %v1028 = vlaneseq
          %v1029 = vshrl.u32 %v1028, 7
          %v1030 = vsub.s32 %v1027, %v1029
          %v1031 = vrot.slane %v996, %v1030
          %v1032 = vcombine.high %v1031, %v1031
          %v1034 = vshrl.u32 %v1007, 16
          %v1036 = vrot.slane %v1034, 6
          %v1037 = vshll.u32 %v1007, 16
          %v1039 = vrot.slane %v1037, 7
          %v1040 = vor.u32 %v1036, %v1039
          %v1041 = vrot.slane %v1040, 2
          %v1043 = vshll.u32 %v1008, 16
          %v1045 = vrot.slane %v1043, 7
          %v1046 = vsel %vm371, %v1041, %v1045
          %v1048 = vshrl.u32 %v1015, 16
          %v1050 = vrot.slane %v1048, 6
          %v1051 = vshll.u32 %v1015, 16
          %v1053 = vrot.slane %v1051, 7
          %v1054 = vor.u32 %v1050, %v1053
          %v1055 = vrot.slane %v1054, 2
          %v1057 = vshll.u32 %v1016, 16
          %v1059 = vrot.slane %v1057, 7
          %v1060 = vsel %vm371, %v1055, %v1059
          %v1062 = vshrl.u32 %v1023, 16
          %v1064 = vrot.slane %v1062, 6
          %v1065 = vshll.u32 %v1023, 16
          %v1067 = vrot.slane %v1065, 7
          %v1068 = vor.u32 %v1064, %v1067
          %v1069 = vrot.slane %v1068, 2
          %v1071 = vshll.u32 %v1024, 16
          %v1073 = vrot.slane %v1071, 7
          %v1074 = vsel %vm371, %v1069, %v1073
          %v1076 = vshrl.u32 %v1031, 16
          %v1078 = vrot.slane %v1076, 6
          %v1079 = vshll.u32 %v1031, 16
          %v1081 = vrot.slane %v1079, 7
          %v1082 = vor.u32 %v1078, %v1081
          %v1083 = vrot.slane %v1082, 2
          %v1085 = vshll.u32 %v1032, 16
          %v1087 = vrot.slane %v1085, 7
          %v1088 = vsel %vm371, %v1083, %v1087
          %v1089 = vcombine.low %v1046, %v1060
          %v1090 = vcombine.low %v1074, %v1088
          %v1092 = vunpack.c.l.s4 1983009808
          %v1093 = vunpack.c.0.s8 %v1092
          %v1094 = vlaneseq
          %v1095 = vshrl.u32 %v1094, 7
          %v1096 = vsub.s32 %v1093, %v1095
          %v1097 = vrot.slane %v1089, %v1096
          %v1099 = vunpack.c.l.s4 1983009808
          %v1100 = vunpack.c.0.s8 %v1099
          %v1101 = vlaneseq
          %v1102 = vshrl.u32 %v1101, 7
          %v1103 = vsub.s32 %v1100, %v1102
          %v1104 = vrot.slane %v1090, %v1103
          %v1105 = vcombine.low %v1097, %v1104
          %1107 = vst [vmem:[#allocation2 + $0x50] sm:$0xff] %v1105
          %v1108 = vld [vmem:[%s965] sm:$0x6]
          %v1109 = vld [vmem:[%s965 + $0x4] sm:$0x6]
          %v1110 = vld [vmem:[%s965 + $0x8] sm:$0x6]
          %v1111 = vld [vmem:[%s965 + $0xc] sm:$0x6]
          %v1117 = vunpack.c.l.s4 1983009808
          %v1118 = vunpack.c.0.s8 %v1117
          %v1119 = vlaneseq
          %v1120 = vshrl.u32 %v1119, 7
          %v1121 = vsub.s32 %v1118, %v1120
          %v1122 = vrot.slane %v1108, %v1121
          %v1123 = vcombine.high %v1122, %v1122
          %v1125 = vunpack.c.l.s4 1983009808
          %v1126 = vunpack.c.0.s8 %v1125
          %v1127 = vlaneseq
          %v1128 = vshrl.u32 %v1127, 7
          %v1129 = vsub.s32 %v1126, %v1128
          %v1130 = vrot.slane %v1109, %v1129
          %v1131 = vcombine.high %v1130, %v1130
          %v1133 = vunpack.c.l.s4 1983009808
          %v1134 = vunpack.c.0.s8 %v1133
          %v1135 = vlaneseq
          %v1136 = vshrl.u32 %v1135, 7
          %v1137 = vsub.s32 %v1134, %v1136
          %v1138 = vrot.slane %v1110, %v1137
          %v1139 = vcombine.high %v1138, %v1138
          %v1141 = vunpack.c.l.s4 1983009808
          %v1142 = vunpack.c.0.s8 %v1141
          %v1143 = vlaneseq
          %v1144 = vshrl.u32 %v1143, 7
          %v1145 = vsub.s32 %v1142, %v1144
          %v1146 = vrot.slane %v1111, %v1145
          %v1147 = vcombine.high %v1146, %v1146
          %v1148 = vrot.slane %v1122, 7
          %v1149 = vrot.slane %v1148, 2
          %v1150 = vrot.slane %v1123, 7
          %v1151 = vsel %vm493, %v1149, %v1150
          %v1152 = vrot.slane %v1130, 7
          %v1153 = vrot.slane %v1152, 2
          %v1154 = vrot.slane %v1131, 7
          %v1155 = vsel %vm493, %v1153, %v1154
          %v1156 = vrot.slane %v1138, 7
          %v1157 = vrot.slane %v1156, 2
          %v1158 = vrot.slane %v1139, 7
          %v1159 = vsel %vm493, %v1157, %v1158
          %v1160 = vrot.slane %v1146, 7
          %v1161 = vrot.slane %v1160, 2
          %v1162 = vrot.slane %v1147, 7
          %v1163 = vsel %vm493, %v1161, %v1162
          %v1164 = vcombine.low %v1151, %v1155
          %v1165 = vcombine.low %v1159, %v1163
          %v1167 = vunpack.c.l.s4 1983009808
          %v1168 = vunpack.c.0.s8 %v1167
          %v1169 = vlaneseq
          %v1170 = vshrl.u32 %v1169, 7
          %v1171 = vsub.s32 %v1168, %v1170
          %v1172 = vrot.slane %v1164, %v1171
          %v1174 = vunpack.c.l.s4 1983009808
          %v1175 = vunpack.c.0.s8 %v1174
          %v1176 = vlaneseq
          %v1177 = vshrl.u32 %v1176, 7
          %v1178 = vsub.s32 %v1175, %v1177
          %v1179 = vrot.slane %v1165, %v1178
          %v1180 = vcombine.low %v1172, %v1179
          %1182 = vst [vmem:[#allocation2 + $0x58] sm:$0xff] %v1180
          %s1183 = scalar_lea.vmem %s0, 28
          %v1184 = vld [vmem:[%s1183] sm:$0x3]
          %v1185 = vld [vmem:[%s1183 + $0x4] sm:$0x3]
          %v1186 = vld [vmem:[%s1183 + $0x8] sm:$0x3]
          %v1187 = vld [vmem:[%s1183 + $0xc] sm:$0x3]
          %v1192 = vcombine.low %v1184, %v1185
          %v1193 = vcombine.low %v1186, %v1187
          %v1195 = vunpack.c.l.s4 1983009808
          %v1196 = vunpack.c.0.s8 %v1195
          %v1197 = vlaneseq
          %v1198 = vshrl.u32 %v1197, 7
          %v1199 = vsub.s32 %v1196, %v1198
          %v1200 = vrot.slane %v1192, %v1199
          %v1202 = vunpack.c.l.s4 1983009808
          %v1203 = vunpack.c.0.s8 %v1202
          %v1204 = vlaneseq
          %v1205 = vshrl.u32 %v1204, 7
          %v1206 = vsub.s32 %v1203, %v1205
          %v1207 = vrot.slane %v1193, %v1206
          %v1208 = vcombine.low %v1200, %v1207
          %1210 = vst [vmem:[#allocation2 + $0x60] sm:$0xff] %v1208
          %v1211 = vld [vmem:[%s1183] sm:$0x7]
          %v1212 = vld [vmem:[%s1183 + $0x4] sm:$0x7]
          %v1213 = vld [vmem:[%s1183 + $0x8] sm:$0x7]
          %v1214 = vld [vmem:[%s1183 + $0xc] sm:$0x7]
          %v1220 = vunpack.c.l.s4 1983009808
          %v1221 = vunpack.c.0.s8 %v1220
          %v1222 = vlaneseq
          %v1223 = vshrl.u32 %v1222, 7
          %v1224 = vsub.s32 %v1221, %v1223
          %v1225 = vrot.slane %v1211, %v1224
          %v1226 = vcombine.high %v1225, %v1225
          %v1228 = vunpack.c.l.s4 1983009808
          %v1229 = vunpack.c.0.s8 %v1228
          %v1230 = vlaneseq
          %v1231 = vshrl.u32 %v1230, 7
          %v1232 = vsub.s32 %v1229, %v1231
          %v1233 = vrot.slane %v1212, %v1232
          %v1234 = vcombine.high %v1233, %v1233
          %v1236 = vunpack.c.l.s4 1983009808
          %v1237 = vunpack.c.0.s8 %v1236
          %v1238 = vlaneseq
          %v1239 = vshrl.u32 %v1238, 7
          %v1240 = vsub.s32 %v1237, %v1239
          %v1241 = vrot.slane %v1213, %v1240
          %v1242 = vcombine.high %v1241, %v1241
          %v1244 = vunpack.c.l.s4 1983009808
          %v1245 = vunpack.c.0.s8 %v1244
          %v1246 = vlaneseq
          %v1247 = vshrl.u32 %v1246, 7
          %v1248 = vsub.s32 %v1245, %v1247
          %v1249 = vrot.slane %v1214, %v1248
          %v1250 = vcombine.high %v1249, %v1249
          %v1252 = vshrl.u32 %v1225, 16
          %v1254 = vrot.slane %v1252, 6
          %v1255 = vshll.u32 %v1225, 16
          %v1257 = vrot.slane %v1255, 7
          %v1258 = vor.u32 %v1254, %v1257
          %v1259 = vrot.slane %v1258, 2
          %v1261 = vshll.u32 %v1226, 16
          %v1263 = vrot.slane %v1261, 7
          %v1264 = vsel %vm371, %v1259, %v1263
          %v1266 = vshrl.u32 %v1233, 16
          %v1268 = vrot.slane %v1266, 6
          %v1269 = vshll.u32 %v1233, 16
          %v1271 = vrot.slane %v1269, 7
          %v1272 = vor.u32 %v1268, %v1271
          %v1273 = vrot.slane %v1272, 2
          %v1275 = vshll.u32 %v1234, 16
          %v1277 = vrot.slane %v1275, 7
          %v1278 = vsel %vm371, %v1273, %v1277
          %v1280 = vshrl.u32 %v1241, 16
          %v1282 = vrot.slane %v1280, 6
          %v1283 = vshll.u32 %v1241, 16
          %v1285 = vrot.slane %v1283, 7
          %v1286 = vor.u32 %v1282, %v1285
          %v1287 = vrot.slane %v1286, 2
          %v1289 = vshll.u32 %v1242, 16
          %v1291 = vrot.slane %v1289, 7
          %v1292 = vsel %vm371, %v1287, %v1291
          %v1294 = vshrl.u32 %v1249, 16
          %v1296 = vrot.slane %v1294, 6
          %v1297 = vshll.u32 %v1249, 16
          %v1299 = vrot.slane %v1297, 7
          %v1300 = vor.u32 %v1296, %v1299
          %v1301 = vrot.slane %v1300, 2
          %v1303 = vshll.u32 %v1250, 16
          %v1305 = vrot.slane %v1303, 7
          %v1306 = vsel %vm371, %v1301, %v1305
          %v1307 = vcombine.low %v1264, %v1278
          %v1308 = vcombine.low %v1292, %v1306
          %v1310 = vunpack.c.l.s4 1983009808
          %v1311 = vunpack.c.0.s8 %v1310
          %v1312 = vlaneseq
          %v1313 = vshrl.u32 %v1312, 7
          %v1314 = vsub.s32 %v1311, %v1313
          %v1315 = vrot.slane %v1307, %v1314
          %v1317 = vunpack.c.l.s4 1983009808
          %v1318 = vunpack.c.0.s8 %v1317
          %v1319 = vlaneseq
          %v1320 = vshrl.u32 %v1319, 7
          %v1321 = vsub.s32 %v1318, %v1320
          %v1322 = vrot.slane %v1308, %v1321
          %v1323 = vcombine.low %v1315, %v1322
          %1325 = vst [vmem:[#allocation2 + $0x68] sm:$0xff] %v1323
          %v1326 = vld [vmem:[%s1183] sm:$0x6]
          %v1327 = vld [vmem:[%s1183 + $0x4] sm:$0x6]
          %v1328 = vld [vmem:[%s1183 + $0x8] sm:$0x6]
          %v1329 = vld [vmem:[%s1183 + $0xc] sm:$0x6]
          %v1335 = vunpack.c.l.s4 1983009808
          %v1336 = vunpack.c.0.s8 %v1335
          %v1337 = vlaneseq
          %v1338 = vshrl.u32 %v1337, 7
          %v1339 = vsub.s32 %v1336, %v1338
          %v1340 = vrot.slane %v1326, %v1339
          %v1341 = vcombine.high %v1340, %v1340
          %v1343 = vunpack.c.l.s4 1983009808
          %v1344 = vunpack.c.0.s8 %v1343
          %v1345 = vlaneseq
          %v1346 = vshrl.u32 %v1345, 7
          %v1347 = vsub.s32 %v1344, %v1346
          %v1348 = vrot.slane %v1327, %v1347
          %v1349 = vcombine.high %v1348, %v1348
          %v1351 = vunpack.c.l.s4 1983009808
          %v1352 = vunpack.c.0.s8 %v1351
          %v1353 = vlaneseq
          %v1354 = vshrl.u32 %v1353, 7
          %v1355 = vsub.s32 %v1352, %v1354
          %v1356 = vrot.slane %v1328, %v1355
          %v1357 = vcombine.high %v1356, %v1356
          %v1359 = vunpack.c.l.s4 1983009808
          %v1360 = vunpack.c.0.s8 %v1359
          %v1361 = vlaneseq
          %v1362 = vshrl.u32 %v1361, 7
          %v1363 = vsub.s32 %v1360, %v1362
          %v1364 = vrot.slane %v1329, %v1363
          %v1365 = vcombine.high %v1364, %v1364
          %v1366 = vrot.slane %v1340, 7
          %v1367 = vrot.slane %v1366, 2
          %v1368 = vrot.slane %v1341, 7
          %v1369 = vsel %vm493, %v1367, %v1368
          %v1370 = vrot.slane %v1348, 7
          %v1371 = vrot.slane %v1370, 2
          %v1372 = vrot.slane %v1349, 7
          %v1373 = vsel %vm493, %v1371, %v1372
          %v1374 = vrot.slane %v1356, 7
          %v1375 = vrot.slane %v1374, 2
          %v1376 = vrot.slane %v1357, 7
          %v1377 = vsel %vm493, %v1375, %v1376
          %v1378 = vrot.slane %v1364, 7
          %v1379 = vrot.slane %v1378, 2
          %v1380 = vrot.slane %v1365, 7
          %v1381 = vsel %vm493, %v1379, %v1380
          %v1382 = vcombine.low %v1369, %v1373
          %v1383 = vcombine.low %v1377, %v1381
          %v1385 = vunpack.c.l.s4 1983009808
          %v1386 = vunpack.c.0.s8 %v1385
          %v1387 = vlaneseq
          %v1388 = vshrl.u32 %v1387, 7
          %v1389 = vsub.s32 %v1386, %v1388
          %v1390 = vrot.slane %v1382, %v1389
          %v1392 = vunpack.c.l.s4 1983009808
          %v1393 = vunpack.c.0.s8 %v1392
          %v1394 = vlaneseq
          %v1395 = vshrl.u32 %v1394, 7
          %v1396 = vsub.s32 %v1393, %v1395
          %v1397 = vrot.slane %v1383, %v1396
          %v1398 = vcombine.low %v1390, %v1397
          %1400 = vst [vmem:[#allocation2 + $0x70] sm:$0xff] %v1398
          %s1401 = scalar_lea.vmem %s0, 32
          %v1402 = vld [vmem:[%s1401] sm:$0x3]
          %v1403 = vld [vmem:[%s1401 + $0x4] sm:$0x3]
          %v1404 = vld [vmem:[%s1401 + $0x8] sm:$0x3]
          %v1405 = vld [vmem:[%s1401 + $0xc] sm:$0x3]
          %v1410 = vcombine.low %v1402, %v1403
          %v1411 = vcombine.low %v1404, %v1405
          %v1413 = vunpack.c.l.s4 1983009808
          %v1414 = vunpack.c.0.s8 %v1413
          %v1415 = vlaneseq
          %v1416 = vshrl.u32 %v1415, 7
          %v1417 = vsub.s32 %v1414, %v1416
          %v1418 = vrot.slane %v1410, %v1417
          %v1420 = vunpack.c.l.s4 1983009808
          %v1421 = vunpack.c.0.s8 %v1420
          %v1422 = vlaneseq
          %v1423 = vshrl.u32 %v1422, 7
          %v1424 = vsub.s32 %v1421, %v1423
          %v1425 = vrot.slane %v1411, %v1424
          %v1426 = vcombine.low %v1418, %v1425
          %1428 = vst [vmem:[#allocation2 + $0x78] sm:$0xff] %v1426
          %v1429 = vld [vmem:[%s1401] sm:$0x7]
          %v1430 = vld [vmem:[%s1401 + $0x4] sm:$0x7]
          %v1431 = vld [vmem:[%s1401 + $0x8] sm:$0x7]
          %v1432 = vld [vmem:[%s1401 + $0xc] sm:$0x7]
          %v1438 = vunpack.c.l.s4 1983009808
          %v1439 = vunpack.c.0.s8 %v1438
          %v1440 = vlaneseq
          %v1441 = vshrl.u32 %v1440, 7
          %v1442 = vsub.s32 %v1439, %v1441
          %v1443 = vrot.slane %v1429, %v1442
          %v1444 = vcombine.high %v1443, %v1443
          %v1446 = vunpack.c.l.s4 1983009808
          %v1447 = vunpack.c.0.s8 %v1446
          %v1448 = vlaneseq
          %v1449 = vshrl.u32 %v1448, 7
          %v1450 = vsub.s32 %v1447, %v1449
          %v1451 = vrot.slane %v1430, %v1450
          %v1452 = vcombine.high %v1451, %v1451
          %v1454 = vunpack.c.l.s4 1983009808
          %v1455 = vunpack.c.0.s8 %v1454
          %v1456 = vlaneseq
          %v1457 = vshrl.u32 %v1456, 7
          %v1458 = vsub.s32 %v1455, %v1457
          %v1459 = vrot.slane %v1431, %v1458
          %v1460 = vcombine.high %v1459, %v1459
          %v1462 = vunpack.c.l.s4 1983009808
          %v1463 = vunpack.c.0.s8 %v1462
          %v1464 = vlaneseq
          %v1465 = vshrl.u32 %v1464, 7
          %v1466 = vsub.s32 %v1463, %v1465
          %v1467 = vrot.slane %v1432, %v1466
          %v1468 = vcombine.high %v1467, %v1467
          %v1470 = vshrl.u32 %v1443, 16
          %v1472 = vrot.slane %v1470, 6
          %v1473 = vshll.u32 %v1443, 16
          %v1475 = vrot.slane %v1473, 7
          %v1476 = vor.u32 %v1472, %v1475
          %v1477 = vrot.slane %v1476, 2
          %v1479 = vshll.u32 %v1444, 16
          %v1481 = vrot.slane %v1479, 7
          %v1482 = vsel %vm371, %v1477, %v1481
          %v1484 = vshrl.u32 %v1451, 16
          %v1486 = vrot.slane %v1484, 6
          %v1487 = vshll.u32 %v1451, 16
          %v1489 = vrot.slane %v1487, 7
          %v1490 = vor.u32 %v1486, %v1489
          %v1491 = vrot.slane %v1490, 2
          %v1493 = vshll.u32 %v1452, 16
          %v1495 = vrot.slane %v1493, 7
          %v1496 = vsel %vm371, %v1491, %v1495
          %v1498 = vshrl.u32 %v1459, 16
          %v1500 = vrot.slane %v1498, 6
          %v1501 = vshll.u32 %v1459, 16
          %v1503 = vrot.slane %v1501, 7
          %v1504 = vor.u32 %v1500, %v1503
          %v1505 = vrot.slane %v1504, 2
          %v1507 = vshll.u32 %v1460, 16
          %v1509 = vrot.slane %v1507, 7
          %v1510 = vsel %vm371, %v1505, %v1509
          %v1512 = vshrl.u32 %v1467, 16
          %v1514 = vrot.slane %v1512, 6
          %v1515 = vshll.u32 %v1467, 16
          %v1517 = vrot.slane %v1515, 7
          %v1518 = vor.u32 %v1514, %v1517
          %v1519 = vrot.slane %v1518, 2
          %v1521 = vshll.u32 %v1468, 16
          %v1523 = vrot.slane %v1521, 7
          %v1524 = vsel %vm371, %v1519, %v1523
          %v1525 = vcombine.low %v1482, %v1496
          %v1526 = vcombine.low %v1510, %v1524
          %v1528 = vunpack.c.l.s4 1983009808
          %v1529 = vunpack.c.0.s8 %v1528
          %v1530 = vlaneseq
          %v1531 = vshrl.u32 %v1530, 7
          %v1532 = vsub.s32 %v1529, %v1531
          %v1533 = vrot.slane %v1525, %v1532
          %v1535 = vunpack.c.l.s4 1983009808
          %v1536 = vunpack.c.0.s8 %v1535
          %v1537 = vlaneseq
          %v1538 = vshrl.u32 %v1537, 7
          %v1539 = vsub.s32 %v1536, %v1538
          %v1540 = vrot.slane %v1526, %v1539
          %v1541 = vcombine.low %v1533, %v1540
          %1543 = vst [vmem:[#allocation2 + $0x80] sm:$0xff] %v1541
          %v1544 = vld [vmem:[%s1401] sm:$0x6]
          %v1545 = vld [vmem:[%s1401 + $0x4] sm:$0x6]
          %v1546 = vld [vmem:[%s1401 + $0x8] sm:$0x6]
          %v1547 = vld [vmem:[%s1401 + $0xc] sm:$0x6]
          %v1553 = vunpack.c.l.s4 1983009808
          %v1554 = vunpack.c.0.s8 %v1553
          %v1555 = vlaneseq
          %v1556 = vshrl.u32 %v1555, 7
          %v1557 = vsub.s32 %v1554, %v1556
          %v1558 = vrot.slane %v1544, %v1557
          %v1559 = vcombine.high %v1558, %v1558
          %v1561 = vunpack.c.l.s4 1983009808
          %v1562 = vunpack.c.0.s8 %v1561
          %v1563 = vlaneseq
          %v1564 = vshrl.u32 %v1563, 7
          %v1565 = vsub.s32 %v1562, %v1564
          %v1566 = vrot.slane %v1545, %v1565
          %v1567 = vcombine.high %v1566, %v1566
          %v1569 = vunpack.c.l.s4 1983009808
          %v1570 = vunpack.c.0.s8 %v1569
          %v1571 = vlaneseq
          %v1572 = vshrl.u32 %v1571, 7
          %v1573 = vsub.s32 %v1570, %v1572
          %v1574 = vrot.slane %v1546, %v1573
          %v1575 = vcombine.high %v1574, %v1574
          %v1577 = vunpack.c.l.s4 1983009808
          %v1578 = vunpack.c.0.s8 %v1577
          %v1579 = vlaneseq
          %v1580 = vshrl.u32 %v1579, 7
          %v1581 = vsub.s32 %v1578, %v1580
          %v1582 = vrot.slane %v1547, %v1581
          %v1583 = vcombine.high %v1582, %v1582
          %v1584 = vrot.slane %v1558, 7
          %v1585 = vrot.slane %v1584, 2
          %v1586 = vrot.slane %v1559, 7
          %v1587 = vsel %vm493, %v1585, %v1586
          %v1588 = vrot.slane %v1566, 7
          %v1589 = vrot.slane %v1588, 2
          %v1590 = vrot.slane %v1567, 7
          %v1591 = vsel %vm493, %v1589, %v1590
          %v1592 = vrot.slane %v1574, 7
          %v1593 = vrot.slane %v1592, 2
          %v1594 = vrot.slane %v1575, 7
          %v1595 = vsel %vm493, %v1593, %v1594
          %v1596 = vrot.slane %v1582, 7
          %v1597 = vrot.slane %v1596, 2
          %v1598 = vrot.slane %v1583, 7
          %v1599 = vsel %vm493, %v1597, %v1598
          %v1600 = vcombine.low %v1587, %v1591
          %v1601 = vcombine.low %v1595, %v1599
          %v1603 = vunpack.c.l.s4 1983009808
          %v1604 = vunpack.c.0.s8 %v1603
          %v1605 = vlaneseq
          %v1606 = vshrl.u32 %v1605, 7
          %v1607 = vsub.s32 %v1604, %v1606
          %v1608 = vrot.slane %v1600, %v1607
          %v1610 = vunpack.c.l.s4 1983009808
          %v1611 = vunpack.c.0.s8 %v1610
          %v1612 = vlaneseq
          %v1613 = vshrl.u32 %v1612, 7
          %v1614 = vsub.s32 %v1611, %v1613
          %v1615 = vrot.slane %v1601, %v1614
          %v1616 = vcombine.low %v1608, %v1615
          %1618 = vst [vmem:[#allocation2 + $0x88] sm:$0xff] %v1616
        $region52: #{tpu_custom_call.1} parent=35 // pred_fallthru
          _
        %v1619 = vld [vmem:[#allocation2] sm:$0xff]
        %v1620 = vld [vmem:[#allocation2 + $0x8] sm:$0xff]
        %v1621 = vld [vmem:[#allocation2 + $0x10] sm:$0xff]
        %v1622 = vld [vmem:[#allocation2 + $0x18] sm:$0xff]
        %v1623 = vld [vmem:[#allocation2 + $0x20] sm:$0xff]
        %v1624 = vld [vmem:[#allocation2 + $0x28] sm:$0xff]
        %v1625 = vld [vmem:[#allocation2 + $0x30] sm:$0xff]
        %v1626 = vld [vmem:[#allocation2 + $0x38] sm:$0xff]
        %v1627 = vld [vmem:[#allocation2 + $0x40] sm:$0xff]
        %v1628 = vld [vmem:[#allocation2 + $0x48] sm:$0xff]
        %v1629 = vld [vmem:[#allocation2 + $0x50] sm:$0xff]
        %v1630 = vld [vmem:[#allocation2 + $0x58] sm:$0xff]
        %v1631 = vld [vmem:[#allocation2 + $0x60] sm:$0xff]
        %v1632 = vld [vmem:[#allocation2 + $0x68] sm:$0xff]
        %v1633 = vld [vmem:[#allocation2 + $0x70] sm:$0xff]
        %v1634 = vld [vmem:[#allocation2 + $0x78] sm:$0xff]
        %v1635 = vld [vmem:[#allocation2 + $0x80] sm:$0xff]
        %v1636 = vld [vmem:[#allocation2 + $0x88] sm:$0xff]
        %v1637 = vld [vmem:[%s236] sm:$0xff]
        %v1638 = vld [vmem:[%s236 + $0x8] sm:$0xff]
        %v1639 = vld [vmem:[%s236 + $0x10] sm:$0xff]
        %v1640 = vld [vmem:[%s236 + $0x18] sm:$0xff]
        %v1641 = vld [vmem:[%s236 + $0x20] sm:$0xff]
        %v1642 = vld [vmem:[%s236 + $0x28] sm:$0xff]
        %v1643 = vld [vmem:[%s236 + $0x30] sm:$0xff]
        %v1644 = vld [vmem:[%s236 + $0x38] sm:$0xff]
        %v1645 = vld [vmem:[%s236 + $0x40] sm:$0xff]
        %v1646 = vld [vmem:[%s236 + $0x48] sm:$0xff]
        %v1647 = vld [vmem:[%s236 + $0x50] sm:$0xff]
        %v1648 = vld [vmem:[%s236 + $0x58] sm:$0xff]
        %v1649 = vld [vmem:[%s236 + $0x60] sm:$0xff]
        %v1650 = vld [vmem:[%s236 + $0x68] sm:$0xff]
        %v1651 = vld [vmem:[%s236 + $0x70] sm:$0xff]
        %v1652 = vld [vmem:[%s236 + $0x78] sm:$0xff]
        %v1653 = vld [vmem:[%s236 + $0x80] sm:$0xff]
        %v1654 = vld [vmem:[%s236 + $0x88] sm:$0xff]
        %v1655 = vld [vmem:[%s236 + $0x90] sm:$0xff]
        %v1656 = vld [vmem:[%s236 + $0x98] sm:$0xff]
        %v1657 = vld [vmem:[%s236 + $0xa0] sm:$0xff]
        %v1658 = vld [vmem:[%s236 + $0xa8] sm:$0xff]
        %v1659 = vld [vmem:[%s236 + $0xb0] sm:$0xff]
        %v1660 = vld [vmem:[%s236 + $0xb8] sm:$0xff]
        %v1661 = vld [vmem:[%s236 + $0xc0] sm:$0xff]
        %v1662 = vld [vmem:[%s236 + $0xc8] sm:$0xff]
        %v1663 = vld [vmem:[%s236 + $0xd0] sm:$0xff]
        %v1664 = vld [vmem:[%s236 + $0xd8] sm:$0xff]
        %v1665 = vld [vmem:[%s236 + $0xe0] sm:$0xff]
        %v1666 = vld [vmem:[%s236 + $0xe8] sm:$0xff]
        %v1667 = vld [vmem:[%s236 + $0xf0] sm:$0xff]
        %v1668 = vld [vmem:[%s236 + $0xf8] sm:$0xff]
        %v1669 = vld [vmem:[%s236 + $0x100] sm:$0xff]
        %v1670 = vld [vmem:[%s236 + $0x108] sm:$0xff]
        %v1671 = vld [vmem:[%s236 + $0x110] sm:$0xff]
        %v1672 = vld [vmem:[%s236 + $0x118] sm:$0xff]
        %v1673 = vld [vmem:[%s236 + $0x120] sm:$0xff]
        %v1674 = vld [vmem:[%s236 + $0x128] sm:$0xff]
        %v1675 = vld [vmem:[%s236 + $0x130] sm:$0xff]
        %v1676 = vld [vmem:[%s236 + $0x138] sm:$0xff]
        %v1677 = vld [vmem:[%s236 + $0x140] sm:$0xff]
        %v1678 = vld [vmem:[%s236 + $0x148] sm:$0xff]
        %v1679 = vld [vmem:[%s236 + $0x150] sm:$0xff]
        %v1680 = vld [vmem:[%s236 + $0x158] sm:$0xff]
        %v1681 = vld [vmem:[%s236 + $0x160] sm:$0xff]
        %v1682 = vld [vmem:[%s236 + $0x168] sm:$0xff]
        %v1683 = vld [vmem:[%s236 + $0x170] sm:$0xff]
        %v1684 = vld [vmem:[%s236 + $0x178] sm:$0xff]
        %v1685 = vld [vmem:[%s236 + $0x180] sm:$0xff]
        %v1686 = vld [vmem:[%s236 + $0x188] sm:$0xff]
        %v1687 = vld [vmem:[%s236 + $0x190] sm:$0xff]
        %v1688 = vld [vmem:[%s236 + $0x198] sm:$0xff]
        %v1689 = vld [vmem:[%s236 + $0x1a0] sm:$0xff]
        %v1690 = vld [vmem:[%s236 + $0x1a8] sm:$0xff]
        %v1691 = vld [vmem:[%s236 + $0x1b0] sm:$0xff]
        %v1692 = vld [vmem:[%s236 + $0x1b8] sm:$0xff]
        %v1693 = vld [vmem:[%s236 + $0x1c0] sm:$0xff]
        %v1694 = vld [vmem:[%s236 + $0x1c8] sm:$0xff]
        %v1695 = vld [vmem:[%s236 + $0x1d0] sm:$0xff]
        %v1696 = vld [vmem:[%s236 + $0x1d8] sm:$0xff]
        %v1697 = vld [vmem:[%s236 + $0x1e0] sm:$0xff]
        %v1698 = vld [vmem:[%s236 + $0x1e8] sm:$0xff]
        %v1699 = vld [vmem:[%s236 + $0x1f0] sm:$0xff]
        %v1700 = vld [vmem:[%s236 + $0x1f8] sm:$0xff]
        %v1701 = vld [vmem:[%s236 + $0x200] sm:$0xff]
        %v1702 = vld [vmem:[%s236 + $0x208] sm:$0xff]
        %v1703 = vld [vmem:[%s236 + $0x210] sm:$0xff]
        %v1704 = vld [vmem:[%s236 + $0x218] sm:$0xff]
        %v1705 = vld [vmem:[%s236 + $0x220] sm:$0xff]
        %v1706 = vld [vmem:[%s236 + $0x228] sm:$0xff]
        %v1707 = vld [vmem:[%s236 + $0x230] sm:$0xff]
        %v1708 = vld [vmem:[%s236 + $0x238] sm:$0xff]
        %v1709 = vld [vmem:[%s236 + $0x240] sm:$0xff]
        %v1710 = vld [vmem:[%s236 + $0x248] sm:$0xff]
        %v1711 = vld [vmem:[%s236 + $0x250] sm:$0xff]
        %v1712 = vld [vmem:[%s236 + $0x258] sm:$0xff]
        %v1713 = vld [vmem:[%s236 + $0x260] sm:$0xff]
        %v1714 = vld [vmem:[%s236 + $0x268] sm:$0xff]
        %v1715 = vld [vmem:[%s236 + $0x270] sm:$0xff]
        %v1716 = vld [vmem:[%s236 + $0x278] sm:$0xff]
        %v1717 = vld [vmem:[%s236 + $0x280] sm:$0xff]
        %v1718 = vld [vmem:[%s236 + $0x288] sm:$0xff]
        %v1719 = vld [vmem:[%s236 + $0x290] sm:$0xff]
        %v1720 = vld [vmem:[%s236 + $0x298] sm:$0xff]
        %v1721 = vld [vmem:[%s236 + $0x2a0] sm:$0xff]
        %v1722 = vld [vmem:[%s236 + $0x2a8] sm:$0xff]
        %v1723 = vld [vmem:[%s236 + $0x2b0] sm:$0xff]
        %v1724 = vld [vmem:[%s236 + $0x2b8] sm:$0xff]
        %v1725 = vld [vmem:[%s236 + $0x2c0] sm:$0xff]
        %v1726 = vld [vmem:[%s236 + $0x2c8] sm:$0xff]
        %v1727 = vld [vmem:[%s236 + $0x2d0] sm:$0xff]
        %v1728 = vld [vmem:[%s236 + $0x2d8] sm:$0xff]
        %v1729 = vld [vmem:[%s236 + $0x2e0] sm:$0xff]
        %v1730 = vld [vmem:[%s236 + $0x2e8] sm:$0xff]
        %v1731 = vld [vmem:[%s236 + $0x2f0] sm:$0xff]
        %v1732 = vld [vmem:[%s236 + $0x2f8] sm:$0xff]
        %v1733 = vld [vmem:[%s236 + $0x300] sm:$0xff]
        %v1734 = vld [vmem:[%s236 + $0x308] sm:$0xff]
        %v1735 = vld [vmem:[%s236 + $0x310] sm:$0xff]
        %v1736 = vld [vmem:[%s236 + $0x318] sm:$0xff]
        %v1737 = vld [vmem:[%s236 + $0x320] sm:$0xff]
        %v1738 = vld [vmem:[%s236 + $0x328] sm:$0xff]
        %v1739 = vld [vmem:[%s236 + $0x330] sm:$0xff]
        %v1740 = vld [vmem:[%s236 + $0x338] sm:$0xff]
        %v1741 = vld [vmem:[%s236 + $0x340] sm:$0xff]
        %v1742 = vld [vmem:[%s236 + $0x348] sm:$0xff]
        %v1743 = vld [vmem:[%s236 + $0x350] sm:$0xff]
        %v1744 = vld [vmem:[%s236 + $0x358] sm:$0xff]
        %v1745 = vld [vmem:[%s236 + $0x360] sm:$0xff]
        %v1746 = vld [vmem:[%s236 + $0x368] sm:$0xff]
        %v1747 = vld [vmem:[%s236 + $0x370] sm:$0xff]
        %v1748 = vld [vmem:[%s236 + $0x378] sm:$0xff]
        %v1749 = vld [vmem:[%s236 + $0x380] sm:$0xff]
        %v1750 = vld [vmem:[%s236 + $0x388] sm:$0xff]
        %v1751 = vld [vmem:[%s236 + $0x390] sm:$0xff]
        %v1752 = vld [vmem:[%s236 + $0x398] sm:$0xff]
        %v1753 = vld [vmem:[%s236 + $0x3a0] sm:$0xff]
        %v1754 = vld [vmem:[%s236 + $0x3a8] sm:$0xff]
        %v1755 = vld [vmem:[%s236 + $0x3b0] sm:$0xff]
        %v1756 = vld [vmem:[%s236 + $0x3b8] sm:$0xff]
        %v1757 = vld [vmem:[%s236 + $0x3c0] sm:$0xff]
        %v1758 = vld [vmem:[%s236 + $0x3c8] sm:$0xff]
        %v1759 = vld [vmem:[%s236 + $0x3d0] sm:$0xff]
        %v1760 = vld [vmem:[%s236 + $0x3d8] sm:$0xff]
        %v1761 = vld [vmem:[%s236 + $0x3e0] sm:$0xff]
        %v1762 = vld [vmem:[%s236 + $0x3e8] sm:$0xff]
        %v1763 = vld [vmem:[%s236 + $0x3f0] sm:$0xff]
        %v1764 = vld [vmem:[%s236 + $0x3f8] sm:$0xff]
        %v1765 = vld [vmem:[%s236 + $0x400] sm:$0xff]
        %v1766 = vld [vmem:[%s236 + $0x408] sm:$0xff]
        %v1767 = vld [vmem:[%s236 + $0x410] sm:$0xff]
        %v1768 = vld [vmem:[%s236 + $0x418] sm:$0xff]
        %v1769 = vld [vmem:[%s236 + $0x420] sm:$0xff]
        %v1770 = vld [vmem:[%s236 + $0x428] sm:$0xff]
        %v1771 = vld [vmem:[%s236 + $0x430] sm:$0xff]
        %v1772 = vld [vmem:[%s236 + $0x438] sm:$0xff]
        %v1773 = vld [vmem:[%s236 + $0x440] sm:$0xff]
        %v1774 = vld [vmem:[%s236 + $0x448] sm:$0xff]
        %v1775 = vld [vmem:[%s236 + $0x450] sm:$0xff]
        %v1776 = vld [vmem:[%s236 + $0x458] sm:$0xff]
        %v1777 = vld [vmem:[%s236 + $0x460] sm:$0xff]
        %v1778 = vld [vmem:[%s236 + $0x468] sm:$0xff]
        %v1779 = vld [vmem:[%s236 + $0x470] sm:$0xff]
        %v1780 = vld [vmem:[%s236 + $0x478] sm:$0xff]
        %v1925 = vunpack.c.l.b16 %v1637
        %v1926 = vunpack.c.h.b16 %v1637
        %v1927 = vunpack.c.l.b16 %v1638
        %v1928 = vunpack.c.h.b16 %v1638
        %v1929 = vunpack.c.l.b16 %v1639
        %v1930 = vunpack.c.h.b16 %v1639
        %v1931 = vunpack.c.l.b16 %v1640
        %v1932 = vunpack.c.h.b16 %v1640
        %v1933 = vunpack.c.l.b16 %v1641
        %v1934 = vunpack.c.h.b16 %v1641
        %v1935 = vunpack.c.l.b16 %v1642
        %v1936 = vunpack.c.h.b16 %v1642
        %v1937 = vunpack.c.l.b16 %v1643
        %v1938 = vunpack.c.h.b16 %v1643
        %v1939 = vunpack.c.l.b16 %v1644
        %v1940 = vunpack.c.h.b16 %v1644
        %v1941 = vunpack.c.l.b16 %v1645
        %v1942 = vunpack.c.h.b16 %v1645
        %v1943 = vunpack.c.l.b16 %v1646
        %v1944 = vunpack.c.h.b16 %v1646
        %v1945 = vunpack.c.l.b16 %v1647
        %v1946 = vunpack.c.h.b16 %v1647
        %v1947 = vunpack.c.l.b16 %v1648
        %v1948 = vunpack.c.h.b16 %v1648
        %v1949 = vunpack.c.l.b16 %v1649
        %v1950 = vunpack.c.h.b16 %v1649
        %v1951 = vunpack.c.l.b16 %v1650
        %v1952 = vunpack.c.h.b16 %v1650
        %v1953 = vunpack.c.l.b16 %v1651
        %v1954 = vunpack.c.h.b16 %v1651
        %v1955 = vunpack.c.l.b16 %v1652
        %v1956 = vunpack.c.h.b16 %v1652
        %v1957 = vunpack.c.l.b16 %v1653
        %v1958 = vunpack.c.h.b16 %v1653
        %v1959 = vunpack.c.l.b16 %v1654
        %v1960 = vunpack.c.h.b16 %v1654
        %v1961 = vunpack.c.l.b16 %v1655
        %v1962 = vunpack.c.h.b16 %v1655
        %v1963 = vunpack.c.l.b16 %v1656
        %v1964 = vunpack.c.h.b16 %v1656
        %v1965 = vunpack.c.l.b16 %v1657
        %v1966 = vunpack.c.h.b16 %v1657
        %v1967 = vunpack.c.l.b16 %v1658
        %v1968 = vunpack.c.h.b16 %v1658
        %v1969 = vunpack.c.l.b16 %v1659
        %v1970 = vunpack.c.h.b16 %v1659
        %v1971 = vunpack.c.l.b16 %v1660
        %v1972 = vunpack.c.h.b16 %v1660
        %v1973 = vunpack.c.l.b16 %v1661
        %v1974 = vunpack.c.h.b16 %v1661
        %v1975 = vunpack.c.l.b16 %v1662
        %v1976 = vunpack.c.h.b16 %v1662
        %v1977 = vunpack.c.l.b16 %v1663
        %v1978 = vunpack.c.h.b16 %v1663
        %v1979 = vunpack.c.l.b16 %v1664
        %v1980 = vunpack.c.h.b16 %v1664
        %v1981 = vunpack.c.l.b16 %v1665
        %v1982 = vunpack.c.h.b16 %v1665
        %v1983 = vunpack.c.l.b16 %v1666
        %v1984 = vunpack.c.h.b16 %v1666
        %v1985 = vunpack.c.l.b16 %v1667
        %v1986 = vunpack.c.h.b16 %v1667
        %v1987 = vunpack.c.l.b16 %v1668
        %v1988 = vunpack.c.h.b16 %v1668
        %v1989 = vunpack.c.l.b16 %v1669
        %v1990 = vunpack.c.h.b16 %v1669
        %v1991 = vunpack.c.l.b16 %v1670
        %v1992 = vunpack.c.h.b16 %v1670
        %v1993 = vunpack.c.l.b16 %v1671
        %v1994 = vunpack.c.h.b16 %v1671
        %v1995 = vunpack.c.l.b16 %v1672
        %v1996 = vunpack.c.h.b16 %v1672
        %v1997 = vunpack.c.l.b16 %v1673
        %v1998 = vunpack.c.h.b16 %v1673
        %v1999 = vunpack.c.l.b16 %v1674
        %v2000 = vunpack.c.h.b16 %v1674
        %v2001 = vunpack.c.l.b16 %v1675
        %v2002 = vunpack.c.h.b16 %v1675
        %v2003 = vunpack.c.l.b16 %v1676
        %v2004 = vunpack.c.h.b16 %v1676
        %v2005 = vunpack.c.l.b16 %v1677
        %v2006 = vunpack.c.h.b16 %v1677
        %v2007 = vunpack.c.l.b16 %v1678
        %v2008 = vunpack.c.h.b16 %v1678
        %v2009 = vunpack.c.l.b16 %v1679
        %v2010 = vunpack.c.h.b16 %v1679
        %v2011 = vunpack.c.l.b16 %v1680
        %v2012 = vunpack.c.h.b16 %v1680
        %v2013 = vunpack.c.l.b16 %v1681
        %v2014 = vunpack.c.h.b16 %v1681
        %v2015 = vunpack.c.l.b16 %v1682
        %v2016 = vunpack.c.h.b16 %v1682
        %v2017 = vunpack.c.l.b16 %v1683
        %v2018 = vunpack.c.h.b16 %v1683
        %v2019 = vunpack.c.l.b16 %v1684
        %v2020 = vunpack.c.h.b16 %v1684
        %v2021 = vunpack.c.l.b16 %v1685
        %v2022 = vunpack.c.h.b16 %v1685
        %v2023 = vunpack.c.l.b16 %v1686
        %v2024 = vunpack.c.h.b16 %v1686
        %v2025 = vunpack.c.l.b16 %v1687
        %v2026 = vunpack.c.h.b16 %v1687
        %v2027 = vunpack.c.l.b16 %v1688
        %v2028 = vunpack.c.h.b16 %v1688
        %v2029 = vunpack.c.l.b16 %v1689
        %v2030 = vunpack.c.h.b16 %v1689
        %v2031 = vunpack.c.l.b16 %v1690
        %v2032 = vunpack.c.h.b16 %v1690
        %v2033 = vunpack.c.l.b16 %v1691
        %v2034 = vunpack.c.h.b16 %v1691
        %v2035 = vunpack.c.l.b16 %v1692
        %v2036 = vunpack.c.h.b16 %v1692
        %v2037 = vunpack.c.l.b16 %v1693
        %v2038 = vunpack.c.h.b16 %v1693
        %v2039 = vunpack.c.l.b16 %v1694
        %v2040 = vunpack.c.h.b16 %v1694
        %v2041 = vunpack.c.l.b16 %v1695
        %v2042 = vunpack.c.h.b16 %v1695
        %v2043 = vunpack.c.l.b16 %v1696
        %v2044 = vunpack.c.h.b16 %v1696
        %v2045 = vunpack.c.l.b16 %v1697
        %v2046 = vunpack.c.h.b16 %v1697
        %v2047 = vunpack.c.l.b16 %v1698
        %v2048 = vunpack.c.h.b16 %v1698
        %v2049 = vunpack.c.l.b16 %v1699
        %v2050 = vunpack.c.h.b16 %v1699
        %v2051 = vunpack.c.l.b16 %v1700
        %v2052 = vunpack.c.h.b16 %v1700
        %v2053 = vunpack.c.l.b16 %v1701
        %v2054 = vunpack.c.h.b16 %v1701
        %v2055 = vunpack.c.l.b16 %v1702
        %v2056 = vunpack.c.h.b16 %v1702
        %v2057 = vunpack.c.l.b16 %v1703
        %v2058 = vunpack.c.h.b16 %v1703
        %v2059 = vunpack.c.l.b16 %v1704
        %v2060 = vunpack.c.h.b16 %v1704
        %v2061 = vunpack.c.l.b16 %v1705
        %v2062 = vunpack.c.h.b16 %v1705
        %v2063 = vunpack.c.l.b16 %v1706
        %v2064 = vunpack.c.h.b16 %v1706
        %v2065 = vunpack.c.l.b16 %v1707
        %v2066 = vunpack.c.h.b16 %v1707
        %v2067 = vunpack.c.l.b16 %v1708
        %v2068 = vunpack.c.h.b16 %v1708
        %v2069 = vunpack.c.l.b16 %v1709
        %v2070 = vunpack.c.h.b16 %v1709
        %v2071 = vunpack.c.l.b16 %v1710
        %v2072 = vunpack.c.h.b16 %v1710
        %v2073 = vunpack.c.l.b16 %v1711
        %v2074 = vunpack.c.h.b16 %v1711
        %v2075 = vunpack.c.l.b16 %v1712
        %v2076 = vunpack.c.h.b16 %v1712
        %v2077 = vunpack.c.l.b16 %v1713
        %v2078 = vunpack.c.h.b16 %v1713
        %v2079 = vunpack.c.l.b16 %v1714
        %v2080 = vunpack.c.h.b16 %v1714
        %v2081 = vunpack.c.l.b16 %v1715
        %v2082 = vunpack.c.h.b16 %v1715
        %v2083 = vunpack.c.l.b16 %v1716
        %v2084 = vunpack.c.h.b16 %v1716
        %v2085 = vunpack.c.l.b16 %v1717
        %v2086 = vunpack.c.h.b16 %v1717
        %v2087 = vunpack.c.l.b16 %v1718
        %v2088 = vunpack.c.h.b16 %v1718
        %v2089 = vunpack.c.l.b16 %v1719
        %v2090 = vunpack.c.h.b16 %v1719
        %v2091 = vunpack.c.l.b16 %v1720
        %v2092 = vunpack.c.h.b16 %v1720
        %v2093 = vunpack.c.l.b16 %v1721
        %v2094 = vunpack.c.h.b16 %v1721
        %v2095 = vunpack.c.l.b16 %v1722
        %v2096 = vunpack.c.h.b16 %v1722
        %v2097 = vunpack.c.l.b16 %v1723
        %v2098 = vunpack.c.h.b16 %v1723
        %v2099 = vunpack.c.l.b16 %v1724
        %v2100 = vunpack.c.h.b16 %v1724
        %v2101 = vunpack.c.l.b16 %v1725
        %v2102 = vunpack.c.h.b16 %v1725
        %v2103 = vunpack.c.l.b16 %v1726
        %v2104 = vunpack.c.h.b16 %v1726
        %v2105 = vunpack.c.l.b16 %v1727
        %v2106 = vunpack.c.h.b16 %v1727
        %v2107 = vunpack.c.l.b16 %v1728
        %v2108 = vunpack.c.h.b16 %v1728
        %v2109 = vunpack.c.l.b16 %v1729
        %v2110 = vunpack.c.h.b16 %v1729
        %v2111 = vunpack.c.l.b16 %v1730
        %v2112 = vunpack.c.h.b16 %v1730
        %v2113 = vunpack.c.l.b16 %v1731
        %v2114 = vunpack.c.h.b16 %v1731
        %v2115 = vunpack.c.l.b16 %v1732
        %v2116 = vunpack.c.h.b16 %v1732
        %v2117 = vunpack.c.l.b16 %v1733
        %v2118 = vunpack.c.h.b16 %v1733
        %v2119 = vunpack.c.l.b16 %v1734
        %v2120 = vunpack.c.h.b16 %v1734
        %v2121 = vunpack.c.l.b16 %v1735
        %v2122 = vunpack.c.h.b16 %v1735
        %v2123 = vunpack.c.l.b16 %v1736
        %v2124 = vunpack.c.h.b16 %v1736
        %v2125 = vunpack.c.l.b16 %v1737
        %v2126 = vunpack.c.h.b16 %v1737
        %v2127 = vunpack.c.l.b16 %v1738
        %v2128 = vunpack.c.h.b16 %v1738
        %v2129 = vunpack.c.l.b16 %v1739
        %v2130 = vunpack.c.h.b16 %v1739
        %v2131 = vunpack.c.l.b16 %v1740
        %v2132 = vunpack.c.h.b16 %v1740
        %v2133 = vunpack.c.l.b16 %v1741
        %v2134 = vunpack.c.h.b16 %v1741
        %v2135 = vunpack.c.l.b16 %v1742
        %v2136 = vunpack.c.h.b16 %v1742
        %v2137 = vunpack.c.l.b16 %v1743
        %v2138 = vunpack.c.h.b16 %v1743
        %v2139 = vunpack.c.l.b16 %v1744
        %v2140 = vunpack.c.h.b16 %v1744
        %v2141 = vunpack.c.l.b16 %v1745
        %v2142 = vunpack.c.h.b16 %v1745
        %v2143 = vunpack.c.l.b16 %v1746
        %v2144 = vunpack.c.h.b16 %v1746
        %v2145 = vunpack.c.l.b16 %v1747
        %v2146 = vunpack.c.h.b16 %v1747
        %v2147 = vunpack.c.l.b16 %v1748
        %v2148 = vunpack.c.h.b16 %v1748
        %v2149 = vunpack.c.l.b16 %v1749
        %v2150 = vunpack.c.h.b16 %v1749
        %v2151 = vunpack.c.l.b16 %v1750
        %v2152 = vunpack.c.h.b16 %v1750
        %v2153 = vunpack.c.l.b16 %v1751
        %v2154 = vunpack.c.h.b16 %v1751
        %v2155 = vunpack.c.l.b16 %v1752
        %v2156 = vunpack.c.h.b16 %v1752
        %v2157 = vunpack.c.l.b16 %v1753
        %v2158 = vunpack.c.h.b16 %v1753
        %v2159 = vunpack.c.l.b16 %v1754
        %v2160 = vunpack.c.h.b16 %v1754
        %v2161 = vunpack.c.l.b16 %v1755
        %v2162 = vunpack.c.h.b16 %v1755
        %v2163 = vunpack.c.l.b16 %v1756
        %v2164 = vunpack.c.h.b16 %v1756
        %v2165 = vunpack.c.l.b16 %v1757
        %v2166 = vunpack.c.h.b16 %v1757
        %v2167 = vunpack.c.l.b16 %v1758
        %v2168 = vunpack.c.h.b16 %v1758
        %v2169 = vunpack.c.l.b16 %v1759
        %v2170 = vunpack.c.h.b16 %v1759
        %v2171 = vunpack.c.l.b16 %v1760
        %v2172 = vunpack.c.h.b16 %v1760
        %v2173 = vunpack.c.l.b16 %v1761
        %v2174 = vunpack.c.h.b16 %v1761
        %v2175 = vunpack.c.l.b16 %v1762
        %v2176 = vunpack.c.h.b16 %v1762
        %v2177 = vunpack.c.l.b16 %v1763
        %v2178 = vunpack.c.h.b16 %v1763
        %v2179 = vunpack.c.l.b16 %v1764
        %v2180 = vunpack.c.h.b16 %v1764
        %v2181 = vunpack.c.l.b16 %v1765
        %v2182 = vunpack.c.h.b16 %v1765
        %v2183 = vunpack.c.l.b16 %v1766
        %v2184 = vunpack.c.h.b16 %v1766
        %v2185 = vunpack.c.l.b16 %v1767
        %v2186 = vunpack.c.h.b16 %v1767
        %v2187 = vunpack.c.l.b16 %v1768
        %v2188 = vunpack.c.h.b16 %v1768
        %v2189 = vunpack.c.l.b16 %v1769
        %v2190 = vunpack.c.h.b16 %v1769
        %v2191 = vunpack.c.l.b16 %v1770
        %v2192 = vunpack.c.h.b16 %v1770
        %v2193 = vunpack.c.l.b16 %v1771
        %v2194 = vunpack.c.h.b16 %v1771
        %v2195 = vunpack.c.l.b16 %v1772
        %v2196 = vunpack.c.h.b16 %v1772
        %v2197 = vunpack.c.l.b16 %v1773
        %v2198 = vunpack.c.h.b16 %v1773
        %v2199 = vunpack.c.l.b16 %v1774
        %v2200 = vunpack.c.h.b16 %v1774
        %v2201 = vunpack.c.l.b16 %v1775
        %v2202 = vunpack.c.h.b16 %v1775
        %v2203 = vunpack.c.l.b16 %v1776
        %v2204 = vunpack.c.h.b16 %v1776
        %v2205 = vunpack.c.l.b16 %v1777
        %v2206 = vunpack.c.h.b16 %v1777
        %v2207 = vunpack.c.l.b16 %v1778
        %v2208 = vunpack.c.h.b16 %v1778
        %v2209 = vunpack.c.l.b16 %v1779
        %v2210 = vunpack.c.h.b16 %v1779
        %v2211 = vunpack.c.l.b16 %v1780
        %v2212 = vunpack.c.h.b16 %v1780
        %v2213 = vpack.c.b16 %v1927, %v1925
        %v2214 = vpack.c.b16 %v1928, %v1926
        %v2215 = vpack.c.b16 %v1931, %v1929
        %v2216 = vpack.c.b16 %v1932, %v1930
        %v2217 = vpack.c.b16 %v1935, %v1933
        %v2218 = vpack.c.b16 %v1936, %v1934
        %v2219 = vpack.c.b16 %v1939, %v1937
        %v2220 = vpack.c.b16 %v1940, %v1938
        %v2221 = vpack.c.b16 %v1943, %v1941
        %v2222 = vpack.c.b16 %v1944, %v1942
        %v2223 = vpack.c.b16 %v1947, %v1945
        %v2224 = vpack.c.b16 %v1948, %v1946
        %v2225 = vpack.c.b16 %v1951, %v1949
        %v2226 = vpack.c.b16 %v1952, %v1950
        %v2227 = vpack.c.b16 %v1955, %v1953
        %v2228 = vpack.c.b16 %v1956, %v1954
        %v2229 = vpack.c.b16 %v1959, %v1957
        %v2230 = vpack.c.b16 %v1960, %v1958
        %v2231 = vpack.c.b16 %v1963, %v1961
        %v2232 = vpack.c.b16 %v1964, %v1962
        %v2233 = vpack.c.b16 %v1967, %v1965
        %v2234 = vpack.c.b16 %v1968, %v1966
        %v2235 = vpack.c.b16 %v1971, %v1969
        %v2236 = vpack.c.b16 %v1972, %v1970
        %v2237 = vpack.c.b16 %v1975, %v1973
        %v2238 = vpack.c.b16 %v1976, %v1974
        %v2239 = vpack.c.b16 %v1979, %v1977
        %v2240 = vpack.c.b16 %v1980, %v1978
        %v2241 = vpack.c.b16 %v1983, %v1981
        %v2242 = vpack.c.b16 %v1984, %v1982
        %v2243 = vpack.c.b16 %v1987, %v1985
        %v2244 = vpack.c.b16 %v1988, %v1986
        %v2245 = vpack.c.b16 %v1991, %v1989
        %v2246 = vpack.c.b16 %v1992, %v1990
        %v2247 = vpack.c.b16 %v1995, %v1993
        %v2248 = vpack.c.b16 %v1996, %v1994
        %v2249 = vpack.c.b16 %v1999, %v1997
        %v2250 = vpack.c.b16 %v2000, %v1998
        %v2251 = vpack.c.b16 %v2003, %v2001
        %v2252 = vpack.c.b16 %v2004, %v2002
        %v2253 = vpack.c.b16 %v2007, %v2005
        %v2254 = vpack.c.b16 %v2008, %v2006
        %v2255 = vpack.c.b16 %v2011, %v2009
        %v2256 = vpack.c.b16 %v2012, %v2010
        %v2257 = vpack.c.b16 %v2015, %v2013
        %v2258 = vpack.c.b16 %v2016, %v2014
        %v2259 = vpack.c.b16 %v2019, %v2017
        %v2260 = vpack.c.b16 %v2020, %v2018
        %v2261 = vpack.c.b16 %v2023, %v2021
        %v2262 = vpack.c.b16 %v2024, %v2022
        %v2263 = vpack.c.b16 %v2027, %v2025
        %v2264 = vpack.c.b16 %v2028, %v2026
        %v2265 = vpack.c.b16 %v2031, %v2029
        %v2266 = vpack.c.b16 %v2032, %v2030
        %v2267 = vpack.c.b16 %v2035, %v2033
        %v2268 = vpack.c.b16 %v2036, %v2034
        %v2269 = vpack.c.b16 %v2039, %v2037
        %v2270 = vpack.c.b16 %v2040, %v2038
        %v2271 = vpack.c.b16 %v2043, %v2041
        %v2272 = vpack.c.b16 %v2044, %v2042
        %v2273 = vpack.c.b16 %v2047, %v2045
        %v2274 = vpack.c.b16 %v2048, %v2046
        %v2275 = vpack.c.b16 %v2051, %v2049
        %v2276 = vpack.c.b16 %v2052, %v2050
        %v2277 = vpack.c.b16 %v2055, %v2053
        %v2278 = vpack.c.b16 %v2056, %v2054
        %v2279 = vpack.c.b16 %v2059, %v2057
        %v2280 = vpack.c.b16 %v2060, %v2058
        %v2281 = vpack.c.b16 %v2063, %v2061
        %v2282 = vpack.c.b16 %v2064, %v2062
        %v2283 = vpack.c.b16 %v2067, %v2065
        %v2284 = vpack.c.b16 %v2068, %v2066
        %v2285 = vpack.c.b16 %v2071, %v2069
        %v2286 = vpack.c.b16 %v2072, %v2070
        %v2287 = vpack.c.b16 %v2075, %v2073
        %v2288 = vpack.c.b16 %v2076, %v2074
        %v2289 = vpack.c.b16 %v2079, %v2077
        %v2290 = vpack.c.b16 %v2080, %v2078
        %v2291 = vpack.c.b16 %v2083, %v2081
        %v2292 = vpack.c.b16 %v2084, %v2082
        %v2293 = vpack.c.b16 %v2087, %v2085
        %v2294 = vpack.c.b16 %v2088, %v2086
        %v2295 = vpack.c.b16 %v2091, %v2089
        %v2296 = vpack.c.b16 %v2092, %v2090
        %v2297 = vpack.c.b16 %v2095, %v2093
        %v2298 = vpack.c.b16 %v2096, %v2094
        %v2299 = vpack.c.b16 %v2099, %v2097
        %v2300 = vpack.c.b16 %v2100, %v2098
        %v2301 = vpack.c.b16 %v2103, %v2101
        %v2302 = vpack.c.b16 %v2104, %v2102
        %v2303 = vpack.c.b16 %v2107, %v2105
        %v2304 = vpack.c.b16 %v2108, %v2106
        %v2305 = vpack.c.b16 %v2111, %v2109
        %v2306 = vpack.c.b16 %v2112, %v2110
        %v2307 = vpack.c.b16 %v2115, %v2113
        %v2308 = vpack.c.b16 %v2116, %v2114
        %v2309 = vpack.c.b16 %v2119, %v2117
        %v2310 = vpack.c.b16 %v2120, %v2118
        %v2311 = vpack.c.b16 %v2123, %v2121
        %v2312 = vpack.c.b16 %v2124, %v2122
        %v2313 = vpack.c.b16 %v2127, %v2125
        %v2314 = vpack.c.b16 %v2128, %v2126
        %v2315 = vpack.c.b16 %v2131, %v2129
        %v2316 = vpack.c.b16 %v2132, %v2130
        %v2317 = vpack.c.b16 %v2135, %v2133
        %v2318 = vpack.c.b16 %v2136, %v2134
        %v2319 = vpack.c.b16 %v2139, %v2137
        %v2320 = vpack.c.b16 %v2140, %v2138
        %v2321 = vpack.c.b16 %v2143, %v2141
        %v2322 = vpack.c.b16 %v2144, %v2142
        %v2323 = vpack.c.b16 %v2147, %v2145
        %v2324 = vpack.c.b16 %v2148, %v2146
        %v2325 = vpack.c.b16 %v2151, %v2149
        %v2326 = vpack.c.b16 %v2152, %v2150
        %v2327 = vpack.c.b16 %v2155, %v2153
        %v2328 = vpack.c.b16 %v2156, %v2154
        %v2329 = vpack.c.b16 %v2159, %v2157
        %v2330 = vpack.c.b16 %v2160, %v2158
        %v2331 = vpack.c.b16 %v2163, %v2161
        %v2332 = vpack.c.b16 %v2164, %v2162
        %v2333 = vpack.c.b16 %v2167, %v2165
        %v2334 = vpack.c.b16 %v2168, %v2166
        %v2335 = vpack.c.b16 %v2171, %v2169
        %v2336 = vpack.c.b16 %v2172, %v2170
        %v2337 = vpack.c.b16 %v2175, %v2173
        %v2338 = vpack.c.b16 %v2176, %v2174
        %v2339 = vpack.c.b16 %v2179, %v2177
        %v2340 = vpack.c.b16 %v2180, %v2178
        %v2341 = vpack.c.b16 %v2183, %v2181
        %v2342 = vpack.c.b16 %v2184, %v2182
        %v2343 = vpack.c.b16 %v2187, %v2185
        %v2344 = vpack.c.b16 %v2188, %v2186
        %v2345 = vpack.c.b16 %v2191, %v2189
        %v2346 = vpack.c.b16 %v2192, %v2190
        %v2347 = vpack.c.b16 %v2195, %v2193
        %v2348 = vpack.c.b16 %v2196, %v2194
        %v2349 = vpack.c.b16 %v2199, %v2197
        %v2350 = vpack.c.b16 %v2200, %v2198
        %v2351 = vpack.c.b16 %v2203, %v2201
        %v2352 = vpack.c.b16 %v2204, %v2202
        %v2353 = vpack.c.b16 %v2207, %v2205
        %v2354 = vpack.c.b16 %v2208, %v2206
        %v2355 = vpack.c.b16 %v2211, %v2209
        %v2356 = vpack.c.b16 %v2212, %v2210
        %2501 = vmatprep.subr.bf16.mxu0 %v2214
        %2502 = vmatpush1.bf16.msra.mxu0 %v2213
        %2503 = vmatprep.subr.bf16.mxu0 %v2216
        %2504 = vmatpush1.bf16.msra.mxu0 %v2215
        %2505 = vmatprep.subr.bf16.mxu0 %v2218
        %2506 = vmatpush1.bf16.msra.mxu0 %v2217
        %2507 = vmatprep.subr.bf16.mxu0 %v2220
        %2508 = vmatpush1.bf16.msra.mxu0 %v2219
        %2509 = vmatprep.subr.bf16.mxu0 %v2222
        %2510 = vmatpush1.bf16.msra.mxu0 %v2221
        %2511 = vmatprep.subr.bf16.mxu0 %v2224
        %2512 = vmatpush1.bf16.msra.mxu0 %v2223
        %2513 = vmatprep.subr.bf16.mxu0 %v2226
        %2514 = vmatpush1.bf16.msra.mxu0 %v2225
        %2515 = vmatprep.subr.bf16.mxu0 %v2228
        %2516 = vmatpush1.bf16.msra.mxu0 %v2227
        %2517 = vmatprep.subr.bf16.mxu0 %v2230
        %2518 = vmatpush1.bf16.msra.mxu0 %v2229
        %2519 = vmatprep.subr.bf16.mxu0 %v2232
        %2520 = vmatpush1.bf16.msra.mxu0 %v2231
        %2521 = vmatprep.subr.bf16.mxu0 %v2234
        %2522 = vmatpush1.bf16.msra.mxu0 %v2233
        %2523 = vmatprep.subr.bf16.mxu0 %v2236
        %2524 = vmatpush1.bf16.msra.mxu0 %v2235
        %2525 = vmatprep.subr.bf16.mxu0 %v2238
        %2526 = vmatpush1.bf16.msra.mxu0 %v2237
        %2527 = vmatprep.subr.bf16.mxu0 %v2240
        %2528 = vmatpush1.bf16.msra.mxu0 %v2239
        %2529 = vmatprep.subr.bf16.mxu0 %v2242
        %2530 = vmatpush1.bf16.msra.mxu0 %v2241
        %2531 = vmatprep.subr.bf16.mxu0 %v2244
        %2532 = vmatpush1.bf16.msra.mxu0 %v2243
        %2533 = vmatprep.mubr.bf16.mxu0 %v1620
        %2534 = vmatmul.mubr.bf16.gmra.mrb[0].mxu0 %v1619
        %v2535 = vpop.f32.mrb[0].mxu0
        %v2536 = vadd.f32 0.0, %v2535
        %v2537 = vpop.f32.mrb[0].mxu0
        %v2538 = vadd.f32 0.0, %v2537
        %v2539 = vpop.f32.mrb[0].mxu0
        %v2540 = vadd.f32 0.0, %v2539
        %v2541 = vpop.f32.mrb[0].mxu0
        %v2542 = vadd.f32 0.0, %v2541
        %2543 = vmatprep.mubr.bf16.mxu0 %v1629
        %2544 = vmatmul.mubr.bf16.gmra.mrb[0].mxu0 %v1628
        %v2545 = vpop.f32.mrb[0].mxu0
        %v2546 = vadd.f32 0.0, %v2545
        %v2547 = vpop.f32.mrb[0].mxu0
        %v2548 = vadd.f32 0.0, %v2547
        %v2549 = vpop.f32.mrb[0].mxu0
        %v2550 = vadd.f32 0.0, %v2549
        %v2551 = vpop.f32.mrb[0].mxu0
        %v2552 = vadd.f32 0.0, %v2551
        %2553 = vdwg.mxu0
        %2554 = vmatprep.subr.bf16.mxu0 %v2246
        %2555 = vmatpush1.bf16.msra.mxu0 %v2245
        %2556 = vmatprep.subr.bf16.mxu0 %v2248
        %2557 = vmatpush1.bf16.msra.mxu0 %v2247
        %2558 = vmatprep.subr.bf16.mxu0 %v2250
        %2559 = vmatpush1.bf16.msra.mxu0 %v2249
        %2560 = vmatprep.subr.bf16.mxu0 %v2252
        %2561 = vmatpush1.bf16.msra.mxu0 %v2251
        %2562 = vmatprep.subr.bf16.mxu0 %v2254
        %2563 = vmatpush1.bf16.msra.mxu0 %v2253
        %2564 = vmatprep.subr.bf16.mxu0 %v2256
        %2565 = vmatpush1.bf16.msra.mxu0 %v2255
        %2566 = vmatprep.subr.bf16.mxu0 %v2258
        %2567 = vmatpush1.bf16.msra.mxu0 %v2257
        %2568 = vmatprep.subr.bf16.mxu0 %v2260
        %2569 = vmatpush1.bf16.msra.mxu0 %v2259
        %2570 = vmatprep.subr.bf16.mxu0 %v2262
        %2571 = vmatpush1.bf16.msra.mxu0 %v2261
        %2572 = vmatprep.subr.bf16.mxu0 %v2264
        %2573 = vmatpush1.bf16.msra.mxu0 %v2263
        %2574 = vmatprep.subr.bf16.mxu0 %v2266
        %2575 = vmatpush1.bf16.msra.mxu0 %v2265
        %2576 = vmatprep.subr.bf16.mxu0 %v2268
        %2577 = vmatpush1.bf16.msra.mxu0 %v2267
        %2578 = vmatprep.subr.bf16.mxu0 %v2270
        %2579 = vmatpush1.bf16.msra.mxu0 %v2269
        %2580 = vmatprep.subr.bf16.mxu0 %v2272
        %2581 = vmatpush1.bf16.msra.mxu0 %v2271
        %2582 = vmatprep.subr.bf16.mxu0 %v2274
        %2583 = vmatpush1.bf16.msra.mxu0 %v2273
        %2584 = vmatprep.subr.bf16.mxu0 %v2276
        %2585 = vmatpush1.bf16.msra.mxu0 %v2275
        %2586 = vmatprep.mubr.bf16.mxu0 %v1622
        %2587 = vmatmul.mubr.bf16.gmra.mrb[0].mxu0 %v1621
        %v2588 = vpop.f32.mrb[0].mxu0
        %v2589 = vadd.f32 %v2536, %v2588
        %v2590 = vpop.f32.mrb[0].mxu0
        %v2591 = vadd.f32 %v2538, %v2590
        %v2592 = vpop.f32.mrb[0].mxu0
        %v2593 = vadd.f32 %v2540, %v2592
        %v2594 = vpop.f32.mrb[0].mxu0
        %v2595 = vadd.f32 %v2542, %v2594
        %2596 = vmatprep.mubr.bf16.mxu0 %v1631
        %2597 = vmatmul.mubr.bf16.gmra.mrb[0].mxu0 %v1630
        %v2598 = vpop.f32.mrb[0].mxu0
        %v2599 = vadd.f32 %v2546, %v2598
        %v2600 = vpop.f32.mrb[0].mxu0
        %v2601 = vadd.f32 %v2548, %v2600
        %v2602 = vpop.f32.mrb[0].mxu0
        %v2603 = vadd.f32 %v2550, %v2602
        %v2604 = vpop.f32.mrb[0].mxu0
        %v2605 = vadd.f32 %v2552, %v2604
        %2606 = vdwg.mxu0
        %2607 = vmatprep.subr.bf16.mxu0 %v2278
        %2608 = vmatpush1.bf16.msra.mxu0 %v2277
        %2609 = vmatprep.subr.bf16.mxu0 %v2280
        %2610 = vmatpush1.bf16.msra.mxu0 %v2279
        %2611 = vmatprep.subr.bf16.mxu0 %v2282
        %2612 = vmatpush1.bf16.msra.mxu0 %v2281
        %2613 = vmatprep.subr.bf16.mxu0 %v2284
        %2614 = vmatpush1.bf16.msra.mxu0 %v2283
        %2615 = vmatprep.subr.bf16.mxu0 %v2286
        %2616 = vmatpush1.bf16.msra.mxu0 %v2285
        %2617 = vmatprep.subr.bf16.mxu0 %v2288
        %2618 = vmatpush1.bf16.msra.mxu0 %v2287
        %2619 = vmatprep.subr.bf16.mxu0 %v2290
        %2620 = vmatpush1.bf16.msra.mxu0 %v2289
        %2621 = vmatprep.subr.bf16.mxu0 %v2292
        %2622 = vmatpush1.bf16.msra.mxu0 %v2291
        %2623 = vmatprep.subr.bf16.mxu0 %v2294
        %2624 = vmatpush1.bf16.msra.mxu0 %v2293
        %2625 = vmatprep.subr.bf16.mxu0 %v2296
        %2626 = vmatpush1.bf16.msra.mxu0 %v2295
        %2627 = vmatprep.subr.bf16.mxu0 %v2298
        %2628 = vmatpush1.bf16.msra.mxu0 %v2297
        %2629 = vmatprep.subr.bf16.mxu0 %v2300
        %2630 = vmatpush1.bf16.msra.mxu0 %v2299
        %2631 = vmatprep.subr.bf16.mxu0 %v2302
        %2632 = vmatpush1.bf16.msra.mxu0 %v2301
        %2633 = vmatprep.subr.bf16.mxu0 %v2304
        %2634 = vmatpush1.bf16.msra.mxu0 %v2303
        %2635 = vmatprep.subr.bf16.mxu0 %v2306
        %2636 = vmatpush1.bf16.msra.mxu0 %v2305
        %2637 = vmatprep.subr.bf16.mxu0 %v2308
        %2638 = vmatpush1.bf16.msra.mxu0 %v2307
        %2639 = vmatprep.mubr.bf16.mxu0 %v1624
        %2640 = vmatmul.mubr.bf16.gmra.mrb[0].mxu0 %v1623
        %v2641 = vpop.f32.mrb[0].mxu0
        %v2642 = vadd.f32 %v2589, %v2641
        %v2643 = vpop.f32.mrb[0].mxu0
        %v2644 = vadd.f32 %v2591, %v2643
        %v2645 = vpop.f32.mrb[0].mxu0
        %v2646 = vadd.f32 %v2593, %v2645
        %v2647 = vpop.f32.mrb[0].mxu0
        %v2648 = vadd.f32 %v2595, %v2647
        %2649 = vmatprep.mubr.bf16.mxu0 %v1633
        %2650 = vmatmul.mubr.bf16.gmra.mrb[0].mxu0 %v1632
        %v2651 = vpop.f32.mrb[0].mxu0
        %v2652 = vadd.f32 %v2599, %v2651
        %v2653 = vpop.f32.mrb[0].mxu0
        %v2654 = vadd.f32 %v2601, %v2653
        %v2655 = vpop.f32.mrb[0].mxu0
        %v2656 = vadd.f32 %v2603, %v2655
        %v2657 = vpop.f32.mrb[0].mxu0
        %v2658 = vadd.f32 %v2605, %v2657
        %2659 = vdwg.mxu0
        %2660 = vmatprep.subr.bf16.mxu0 %v2310
        %2661 = vmatpush1.bf16.msra.mxu0 %v2309
        %2662 = vmatprep.subr.bf16.mxu0 %v2312
        %2663 = vmatpush1.bf16.msra.mxu0 %v2311
        %2664 = vmatprep.subr.bf16.mxu0 %v2314
        %2665 = vmatpush1.bf16.msra.mxu0 %v2313
        %2666 = vmatprep.subr.bf16.mxu0 %v2316
        %2667 = vmatpush1.bf16.msra.mxu0 %v2315
        %2668 = vmatprep.subr.bf16.mxu0 %v2318
        %2669 = vmatpush1.bf16.msra.mxu0 %v2317
        %2670 = vmatprep.subr.bf16.mxu0 %v2320
        %2671 = vmatpush1.bf16.msra.mxu0 %v2319
        %2672 = vmatprep.subr.bf16.mxu0 %v2322
        %2673 = vmatpush1.bf16.msra.mxu0 %v2321
        %2674 = vmatprep.subr.bf16.mxu0 %v2324
        %2675 = vmatpush1.bf16.msra.mxu0 %v2323
        %2676 = vmatprep.subr.bf16.mxu0 %v2326
        %2677 = vmatpush1.bf16.msra.mxu0 %v2325
        %2678 = vmatprep.subr.bf16.mxu0 %v2328
        %2679 = vmatpush1.bf16.msra.mxu0 %v2327
        %2680 = vmatprep.subr.bf16.mxu0 %v2330
        %2681 = vmatpush1.bf16.msra.mxu0 %v2329
        %2682 = vmatprep.subr.bf16.mxu0 %v2332
        %2683 = vmatpush1.bf16.msra.mxu0 %v2331
        %2684 = vmatprep.subr.bf16.mxu0 %v2334
        %2685 = vmatpush1.bf16.msra.mxu0 %v2333
        %2686 = vmatprep.subr.bf16.mxu0 %v2336
        %2687 = vmatpush1.bf16.msra.mxu0 %v2335
        %2688 = vmatprep.subr.bf16.mxu0 %v2338
        %2689 = vmatpush1.bf16.msra.mxu0 %v2337
        %2690 = vmatprep.subr.bf16.mxu0 %v2340
        %2691 = vmatpush1.bf16.msra.mxu0 %v2339
        %2692 = vmatprep.mubr.bf16.mxu0 %v1626
        %2693 = vmatmul.mubr.bf16.gmra.mrb[0].mxu0 %v1625
        %v2694 = vpop.f32.mrb[0].mxu0
        %v2695 = vadd.f32 %v2642, %v2694
        %v2696 = vpop.f32.mrb[0].mxu0
        %v2697 = vadd.f32 %v2644, %v2696
        %v2698 = vpop.f32.mrb[0].mxu0
        %v2699 = vadd.f32 %v2646, %v2698
        %v2700 = vpop.f32.mrb[0].mxu0
        %v2701 = vadd.f32 %v2648, %v2700
        %2702 = vmatprep.mubr.bf16.mxu0 %v1635
        %2703 = vmatmul.mubr.bf16.gmra.mrb[0].mxu0 %v1634
        %v2704 = vpop.f32.mrb[0].mxu0
        %v2705 = vadd.f32 %v2652, %v2704
        %v2706 = vpop.f32.mrb[0].mxu0
        %v2707 = vadd.f32 %v2654, %v2706
        %v2708 = vpop.f32.mrb[0].mxu0
        %v2709 = vadd.f32 %v2656, %v2708
        %v2710 = vpop.f32.mrb[0].mxu0
        %v2711 = vadd.f32 %v2658, %v2710
        %2712 = vdwg.mxu0
        %2713 = vmatprep.subr.bf16.mxu0 %v2342
        %2714 = vmatpush1.bf16.msra.mxu0 %v2341
        %2715 = vmatprep.subr.bf16.mxu0 %v2344
        %2716 = vmatpush1.bf16.msra.mxu0 %v2343
        %2717 = vmatprep.subr.bf16.mxu0 %v2346
        %2718 = vmatpush1.bf16.msra.mxu0 %v2345
        %2719 = vmatprep.subr.bf16.mxu0 %v2348
        %2720 = vmatpush1.bf16.msra.mxu0 %v2347
        %2721 = vmatprep.subr.bf16.mxu0 %v2350
        %2722 = vmatpush1.bf16.msra.mxu0 %v2349
        %2723 = vmatprep.subr.bf16.mxu0 %v2352
        %2724 = vmatpush1.bf16.msra.mxu0 %v2351
        %2725 = vmatprep.subr.bf16.mxu0 %v2354
        %2726 = vmatpush1.bf16.msra.mxu0 %v2353
        %2727 = vmatprep.subr.bf16.mxu0 %v2356
        %2728 = vmatpush1.bf16.msra.mxu0 %v2355
        %2729 = vmatprep.subr.bf16.mxu0 0
        %2730 = vmatpush1.bf16.msra.mxu0 0
        %2731 = vmatprep.subr.bf16.mxu0 0
        %2732 = vmatpush1.bf16.msra.mxu0 0
        %2733 = vmatprep.subr.bf16.mxu0 0
        %2734 = vmatpush1.bf16.msra.mxu0 0
        %2735 = vmatprep.subr.bf16.mxu0 0
        %2736 = vmatpush1.bf16.msra.mxu0 0
        %2737 = vmatprep.subr.bf16.mxu0 0
        %2738 = vmatpush1.bf16.msra.mxu0 0
        %2739 = vmatprep.subr.bf16.mxu0 0
        %2740 = vmatpush1.bf16.msra.mxu0 0
        %2741 = vmatprep.subr.bf16.mxu0 0
        %2742 = vmatpush1.bf16.msra.mxu0 0
        %2743 = vmatprep.subr.bf16.mxu0 0
        %2744 = vmatpush1.bf16.msra.mxu0 0
        %2745 = vmatprep.mubr.bf16.mxu0 0
        %2746 = vmatmul.mubr.bf16.gmra.mrb[0].mxu0 %v1627
        %v2747 = vpop.f32.mrb[0].mxu0
        %v2748 = vadd.f32 %v2695, %v2747
        %v2749 = vpop.f32.mrb[0].mxu0
        %v2750 = vadd.f32 %v2697, %v2749
        %v2751 = vpop.f32.mrb[0].mxu0
        %v2752 = vadd.f32 %v2699, %v2751
        %v2753 = vpop.f32.mrb[0].mxu0
        %v2754 = vadd.f32 %v2701, %v2753
        %2755 = vmatprep.mubr.bf16.mxu0 0
        %2756 = vmatmul.mubr.bf16.gmra.mrb[0].mxu0 %v1636
        %v2757 = vpop.f32.mrb[0].mxu0
        %v2758 = vadd.f32 %v2705, %v2757
        %v2759 = vpop.f32.mrb[0].mxu0
        %v2760 = vadd.f32 %v2707, %v2759
        %v2761 = vpop.f32.mrb[0].mxu0
        %v2762 = vadd.f32 %v2709, %v2761
        %v2763 = vpop.f32.mrb[0].mxu0
        %v2764 = vadd.f32 %v2711, %v2763
        %2765 = vdwg.mxu0
        %v2766 = vld [vmem:[%s245] sm:$0x3]
        %v2768 = vlaneseq
        %v2769 = vshrl.u32 %v2768, 7
        %v2770 = vsub.s32 0, %v2769
        %v2771 = vrot.slane %v2766, %v2770
        %v2772 = vlaneseq
        %v2773 = vshrl.u32 %v2772, 7
        %v2774 = vsub.s32 1, %v2773
        %v2775 = vrot.slane %v2766, %v2774
        %v2778 = vmul.f32 %v2748, %v2771
        %v2779 = vmul.f32 %v2750, %v2775
        %v2780 = vmul.f32 %v2752, %v2771
        %v2781 = vmul.f32 %v2754, %v2775
        %v2782 = vmul.f32 %v2758, %v2771
        %v2783 = vmul.f32 %v2760, %v2775
        %v2784 = vmul.f32 %v2762, %v2771
        %v2785 = vmul.f32 %v2764, %v2775
        %v2786 = vld [vmem:[%s254] sm:$0x3]
        %v2788 = vlaneseq
        %v2789 = vshrl.u32 %v2788, 7
        %v2790 = vsub.s32 0, %v2789
        %v2791 = vrot.slane %v2786, %v2790
        %v2792 = vlaneseq
        %v2793 = vshrl.u32 %v2792, 7
        %v2794 = vsub.s32 1, %v2793
        %v2795 = vrot.slane %v2786, %v2794
        %v2798 = vadd.f32 %v2778, %v2791
        %v2799 = vadd.f32 %v2779, %v2795
        %v2800 = vadd.f32 %v2780, %v2791
        %v2801 = vadd.f32 %v2781, %v2795
        %v2802 = vadd.f32 %v2782, %v2791
        %v2803 = vadd.f32 %v2783, %v2795
        %v2804 = vadd.f32 %v2784, %v2791
        %v2805 = vadd.f32 %v2785, %v2795
        %v2806 = vmax.f32 %v2798, 0.0
        %v2807 = vmax.f32 %v2799, 0.0
        %v2808 = vmax.f32 %v2800, 0.0
        %v2809 = vmax.f32 %v2801, 0.0
        %v2810 = vmax.f32 %v2802, 0.0
        %v2811 = vmax.f32 %v2803, 0.0
        %v2812 = vmax.f32 %v2804, 0.0
        %v2813 = vmax.f32 %v2805, 0.0
        %v2814 = vpack.c.bf16 %v2808, %v2806
        %v2815 = vpack.c.bf16 %v2809, %v2807
        %v2816 = vpack.c.bf16 %v2812, %v2810
        %v2817 = vpack.c.bf16 %v2813, %v2811
        %v2822 = vunpack.c.l.b16 %v2814
        %v2823 = vunpack.c.l.b16 %v2815
        %v2824 = vunpack.c.h.b16 %v2814
        %v2825 = vunpack.c.h.b16 %v2815
        %v2826 = vunpack.c.l.b16 %v2816
        %v2827 = vunpack.c.l.b16 %v2817
        %v2828 = vunpack.c.h.b16 %v2816
        %v2829 = vunpack.c.h.b16 %v2817
        %v2830 = vpack.c.b16 %v2823, %v2822
        %v2831 = vpack.c.b16 %v2825, %v2824
        %v2832 = vpack.c.b16 %v2827, %v2826
        %v2833 = vpack.c.b16 %v2829, %v2828
        %2838 = vst [vmem:[%s288] sm:$0xff] %v2830
        %2839 = vst [vmem:[%s288 + $0x8] sm:$0xff] %v2831
        %2840 = vst [vmem:[%s288 + $0x10] sm:$0xff] %v2832
        %2841 = vst [vmem:[%s288 + $0x18] sm:$0xff] %v2833
        %s2842 = sand.u32 %s131, 1
        %s2843 = scalar_lea.sflag [#allocation5], %s2842
        %s2844 = sand.u32 %s131, 1
        %s2845 = smul.addr %s2844, 32
        %s2846 = scalar_lea.vmem [#allocation9], %s2845
        // Predicated region
        $region53: #{tpu_custom_call.1} parent=35 // pred_check
          %p2847 = pneg %p141
        $region54: #{tpu_custom_call.1} parent=35 // pred_check_branch
          %2849 = sbr.rel (%p2847) target = $region56
        $region55: #{tpu_custom_call.1} parent=35 // pred_region
          %s2850 = smul.u32 2, %s24
          %s2852 = ssub.s32 512, 512
          %2853 = vsyncadd %s2843, %s2852
          %s2854 = smul.addr %s2850, 64
          %s2855 = scalar_lea.hbm %s4, %s2854
          %s2856 = sshll.u32 %s2846, 4
          %s2857 = int_to_ptr.vmem [resolvable:$true] %s2856
          %2862 = dma.vmem_to_hbm [thread:$0]  %s2857, 512, %s2855, %s2843, 128, 256, 8
        $region56: #{tpu_custom_call.1} parent=35 // pred_fallthru
          _
      $region36: #{tpu_custom_call.1} parent=5 // pred_fallthru
        _
      %p2863 = scmp.le.s32.totalorder 2, %s19
      // Predicated region
      $region57: #{tpu_custom_call.1} parent=5 // pred_check
        %p2864 = pneg %p2863
      $region58: #{tpu_custom_call.1} parent=5 // pred_check_branch
        %2866 = sbr.rel (%p2864) target = $region60
      $region59: #{tpu_custom_call.1} parent=5 // pred_region
        %s2867 = ssub.s32 %s19, 2
        // Predicated region
        $region61: #{tpu_custom_call.1} parent=59 // pred_check
          %p2868 = pneg %p147
        $region62: #{tpu_custom_call.1} parent=59 // pred_check_branch
          %2870 = sbr.rel (%p2868) target = $region64
        $region63: #{tpu_custom_call.1} parent=59 // pred_region
          %s2871 = sand.u32 %s132, 1
          %s2872 = scalar_lea.sflag [#allocation5], %s2871
          %s2873 = sand.u32 %s132, 1
          %s2874 = smul.addr %s2873, 32
          %s2875 = scalar_lea.vmem [#allocation9], %s2874
          %2876 = dma.done %s2872, 512
        $region64: #{tpu_custom_call.1} parent=59 // pred_fallthru
          _
      $region60: #{tpu_custom_call.1} parent=5 // pred_fallthru
        _
    $region6: #{tpu_custom_call.1} parent=1 // loop_footer
      %s23 = sadd.s32 1, %s19
    $region7: #{tpu_custom_call.1} parent=1 // loop_footer_branch
      %18 = sbr.rel target = $region3
    $region8: #{tpu_custom_call.1} parent=1 // loop_exit
      _
    %2877 = vsyncpa [#allocation4], 1
    %s2878 = scalar_lea.sflag [#allocation4], 1
    %2879 = vsyncpa %s2878, 1
    %2880 = vsyncpa [#allocation7], 1
    %s2881 = scalar_lea.sflag [#allocation7], 1
    %2882 = vsyncpa %s2881, 1
    %2883 = vsyncpa [#allocation5], 1
    %s2884 = scalar_lea.sflag [#allocation5], 1
    %2885 = vsyncpa %s2884, 1

</llo_original>
